<compile_context>
chip_gen: v7x
topology: tpu7x:2x2x1
jax: 0.10.0
libtpu: 0.0.40
codegen_flags: <defaults>
</compile_context>

<pallas_src>
import functools

import jax
import jax.numpy as jnp
import numpy as np
from jax.experimental import pallas as pl
from jax.experimental.pallas import tpu as pltpu

_BT = 8  # batch tile = one sublane group (8 rows of a vreg)


def _rcritic_kernel(x_ref, w_in_ref, w_gx_ref, w_hh_ref, w_out_ref, bias_ref,
                    out_ref, gx_scr, h_scr, *, seq_len, hidden, out_size, unroll):
    """One batch tile (8 padded batch rows) for the whole sequence.

    x_ref is the tile's time-major row block (T*8, I), row = t*8 + b_local.
    """
    T, H, O, BT = seq_len, hidden, out_size, _BT
    H2, H3 = 2 * H, 3 * H

    # ---- Loop-invariant biases (single packed slab operand; hoisted). ----
    b_in = bias_ref[0:1, :H]                                       # (1, H)
    b_gx = bias_ref[1:2, :H3]                                      # (1, 3H) folded
    b_gh = jnp.broadcast_to(bias_ref[2:3, :H3], (BT, H3))          # 0 | 0 | b_hh_n
    b_out = bias_ref[3:4, :O]                                      # (1, O)

    # ---- Hoisted time-parallel pre-pass: relu(x@W_in + b_in), then ONE fused
    # (H,3H) gate-input projection for all T steps into a packed gx scratch. ----
    pre = jnp.maximum(
        jnp.dot(x_ref[...], w_in_ref[...], preferred_element_type=jnp.float32)
        + b_in, 0.0)                                               # (T*8, H)
    gx_scr[...] = jnp.dot(pre, w_gx_ref[...],
                          preferred_element_type=jnp.float32) + b_gx   # (T*8, 3H)

    w_hh = w_hh_ref[...]                                           # (H, 3H) r|z|n

    # ---- Serial GRU recurrence: ONE fused MXU pass + packed gate math / step.
    def step(t, h):
        row0 = pl.multiple_of(t * BT, BT)
        gx = gx_scr[pl.ds(row0, BT), :]                            # (8, 3H) one vld
        gh = jnp.dot(h, w_hh, preferred_element_type=jnp.float32) + b_gh
        # Packed r|z sigmoid: single 2H-wide pass; sigmoid via tanh = 1 EUP op.
        a_rz = gx[:, :H2] + gh[:, :H2]
        rz = 0.5 * jnp.tanh(0.5 * a_rz) + 0.5                      # (8, 2H)
        r = rz[:, :H]
        z = rz[:, H:H2]
        # PyTorch GRU: n = tanh(gx_n + r * (gh_n + b_hh_n)); b_hh_n is in b_gh.
        n = jnp.tanh(gx[:, H2:H3] + r * gh[:, H2:H3])
        h_new = (1.0 - z) * n + z * h
        h_scr[pl.ds(row0, BT), :] = h_new                          # off critical path
        return h_new

    h0 = jnp.zeros((BT, H), jnp.float32)     # module's self.h is None -> zeros
    jax.lax.fori_loop(0, T, step, h0, unroll=unroll)

    # ---- Hoisted output projection: one matmul + one store. ----
    y = jnp.dot(h_scr[...], w_out_ref[...], preferred_element_type=jnp.float32)
    out_ref[...] = (y + b_out).astype(out_ref.dtype)


def rcritic_forward(x_btI, params):
    """x_btI: (B, T, input_size) float32 -> (B, T, output_size) float32."""
    (w_in, b_in, w_ih, w_hh, b_ih, b_hh, w_out, b_out) = params
    B, T, I = x_btI.shape
    H = w_in.shape[1]
    O = w_out.shape[1]
    nbt = (B + _BT - 1) // _BT           # number of 8-row batch tiles
    Bp = nbt * _BT

    # Pad batch to full sublanes; rows laid out per batch tile, time-major:
    # row = g*(T*8) + t*8 + b_local, so every per-step access is an aligned (8,.)
    x_p = jnp.pad(x_btI, ((0, Bp - B), (0, 0), (0, 0)))                    # (Bp,T,I)
    x2 = x_p.reshape(nbt, _BT, T, I).transpose(0, 2, 1, 3).reshape(nbt * T * _BT, I)

    # Gate weights stay as single contiguous (H, 3H) arrays (PyTorch r|z|n order).
    # Fold time-invariant biases into the hoisted gx pre-pass; b_hh_n must stay
    # inside the recurrence (it is gated by r), so it goes in the b_gh row.
    W = max(3 * H, O)
    b_gx = jnp.concatenate(
        [b_ih[:, :H] + b_hh[:, :H],
         b_ih[:, H:2 * H] + b_hh[:, H:2 * H],
         b_ih[:, 2 * H:3 * H]], axis=1)                                    # (1, 3H)
    b_gh = jnp.concatenate(
        [jnp.zeros((1, 2 * H), jnp.float32), b_hh[:, 2 * H:3 * H]], axis=1)
    def _row(v):
        return jnp.pad(v, ((0, 0), (0, W - v.shape[1])))
    bias_slab = jnp.concatenate(
        [_row(b_in), _row(b_gx), _row(b_gh), _row(b_out)], axis=0)         # (4, W)

    kernel = functools.partial(_rcritic_kernel, seq_len=T, hidden=H,
                               out_size=O, unroll=min(T, 8))

    # TODO(synk): for long sequences (gx scratch ~ T*8*128(lane-pad)*4B nearing the
    # scoped VMEM limit, esp. 32 MiB default on v7x) switch to a T-chunked pre-pass
    # (extra "arbitrary" grid axis, h kept resident) and set vmem_limit_bytes.
    out2 = pl.pallas_call(
        kernel,
        out_shape=jax.ShapeDtypeStruct((nbt * T * _BT, O), jnp.float32),
        grid_spec=pltpu.PrefetchScalarGridSpec(
            num_scalar_prefetch=0,
            grid=(nbt,),                         # independent batch tiles
            in_specs=[
                pl.BlockSpec((T * _BT, I), lambda g: (g, 0)),   # x (tile rows)
                pl.BlockSpec((I, H), lambda g: (0, 0)),          # W_in
                pl.BlockSpec((H, 3 * H), lambda g: (0, 0)),      # W_ih fused r|z|n
                pl.BlockSpec((H, 3 * H), lambda g: (0, 0)),      # W_hh fused r|z|n
                pl.BlockSpec((H, O), lambda g: (0, 0)),          # W_out
                pl.BlockSpec((4, W), lambda g: (0, 0)),          # bias slab
            ],
            out_specs=pl.BlockSpec((T * _BT, O), lambda g: (g, 0)),
            scratch_shapes=[
                pltpu.VMEM((T * _BT, 3 * H), jnp.float32),   # packed gx, all steps
                pltpu.VMEM((T * _BT, H), jnp.float32),       # h history
            ],
        ),
        compiler_params=pltpu.CompilerParams(
            dimension_semantics=("parallel",)),   # shards batch tiles on v7x 2-TC
    )(x2, w_in, w_ih, w_hh, w_out, bias_slab)

    out = out2.reshape(nbt, T, _BT, O).transpose(0, 2, 1, 3).reshape(Bp, T, O)
    return out[:B]                                                 # (B, T, O)


def rcritic_reference(x_btI, params):
    """Pure-JAX reference of the same forward pass (for correctness check)."""
    (w_in, b_in, w_ih, w_hh, b_ih, b_hh, w_out, b_out) = params
    B, T, I = x_btI.shape
    H = w_in.shape[1]
    pre = jnp.maximum(jnp.einsum('bti,ih->bth', x_btI, w_in) + b_in, 0.0)

    def step(h, x_t):
        gx = x_t @ w_ih + b_ih
        gh = h @ w_hh + b_hh
        r = jax.nn.sigmoid(gx[:, :H] + gh[:, :H])
        z = jax.nn.sigmoid(gx[:, H:2 * H] + gh[:, H:2 * H])
        n = jnp.tanh(gx[:, 2 * H:] + r * gh[:, 2 * H:])
        h_new = (1.0 - z) * n + z * h
        return h_new, h_new

    h0 = jnp.zeros((B, H), jnp.float32)
    _, hs = jax.lax.scan(step, h0, jnp.transpose(pre, (1, 0, 2)))
    hs = jnp.transpose(hs, (1, 0, 2))                              # (B, T, H)
    return jnp.einsum('bth,ho->bto', hs, w_out) + b_out


def init_params(key, input_size, hidden_size, output_size):
    """Deterministic synthetic init (shapes match nn.Linear / nn.GRU params)."""
    ks = jax.random.split(key, 6)
    w_in = jax.random.uniform(ks[0], (input_size, hidden_size), jnp.float32,
                              -1.0 / np.sqrt(input_size), 1.0 / np.sqrt(input_size))
    b_in = jnp.zeros((1, hidden_size), jnp.float32)
    # GRU weights: xavier_normal; biases zero (as in the module's init loop).
    xav = np.sqrt(2.0 / (3 * hidden_size + hidden_size))
    w_ih = jax.random.normal(ks[1], (hidden_size, 3 * hidden_size), jnp.float32) * xav
    w_hh = jax.random.normal(ks[2], (hidden_size, 3 * hidden_size), jnp.float32) * xav
    b_ih = jnp.zeros((1, 3 * hidden_size), jnp.float32)
    b_hh = jnp.zeros((1, 3 * hidden_size), jnp.float32)
    w_out = jax.random.uniform(ks[3], (hidden_size, output_size), jnp.float32,
                               -1.0 / np.sqrt(hidden_size), 1.0 / np.sqrt(hidden_size))
    b_out = jax.random.uniform(ks[4], (1, output_size), jnp.float32,
                               -1.0 / np.sqrt(hidden_size), 1.0 / np.sqrt(hidden_size))
    return (w_in, b_in, w_ih, w_hh, b_ih, b_hh, w_out, b_out)


if __name__ == "__main__":
    B, T = 2, 8
    input_size, hidden_size, output_size = 16, 32, 4

    key = jax.random.PRNGKey(0)
    k_x, k_p = jax.random.split(key)
    x = jax.random.normal(k_x, (B, T, input_size), jnp.float32)
    params = init_params(k_p, input_size, hidden_size, output_size)

    out = rcritic_forward(x, params)
    out = jax.block_until_ready(out)

    ref = jax.block_until_ready(rcritic_reference(x, params))
    np.testing.assert_allclose(np.asarray(out), np.asarray(ref), rtol=1e-5, atol=1e-5)

    print("KERNEL_OK")
</pallas_src>

<mosaic_0001>
module attributes {stable_mosaic.version = 11 : i64} {
  func.func @_rcritic_kernel(%arg0: i32, %arg1: memref<64x16xf32, #tpu.memory_space<vmem>>, %arg2: memref<16x32xf32, #tpu.memory_space<vmem>>, %arg3: memref<32x96xf32, #tpu.memory_space<vmem>>, %arg4: memref<32x96xf32, #tpu.memory_space<vmem>>, %arg5: memref<32x4xf32, #tpu.memory_space<vmem>>, %arg6: memref<4x96xf32, #tpu.memory_space<vmem>>, %arg7: memref<64x4xf32, #tpu.memory_space<vmem>>, %arg8: memref<64x96xf32, #tpu.memory_space<vmem>>, %arg9: memref<64x32xf32, #tpu.memory_space<vmem>>) attributes {dimension_semantics = [#tpu.dimension_semantics<parallel>], iteration_bounds = array<i64: 1>, scalar_prefetch = 0 : i64, scratch_operands = 2 : i64, tpu.core_type = #tpu.core_type<tc>, window_params = [{transform_indices = @transform_0, window_bounds = array<i64: 64, 16>}, {pipeline_mode = #tpu.pipeline_mode<synchronous>, transform_indices = @transform_1, window_bounds = array<i64: 16, 32>}, {pipeline_mode = #tpu.pipeline_mode<synchronous>, transform_indices = @transform_2, window_bounds = array<i64: 32, 96>}, {pipeline_mode = #tpu.pipeline_mode<synchronous>, transform_indices = @transform_3, window_bounds = array<i64: 32, 96>}, {pipeline_mode = #tpu.pipeline_mode<synchronous>, transform_indices = @transform_4, window_bounds = array<i64: 32, 4>}, {pipeline_mode = #tpu.pipeline_mode<synchronous>, transform_indices = @transform_5, window_bounds = array<i64: 4, 96>}, {transform_indices = @transform_6, window_bounds = array<i64: 64, 4>}]} {
    %c0 = arith.constant 0 : index
    %c0_0 = arith.constant 0 : index
    %0 = vector.load %arg6[%c0, %c0_0] : memref<4x96xf32, #tpu.memory_space<vmem>>, vector<1x32xf32>
    %c1 = arith.constant 1 : index
    %c0_1 = arith.constant 0 : index
    %1 = vector.load %arg6[%c1, %c0_1] : memref<4x96xf32, #tpu.memory_space<vmem>>, vector<1x96xf32>
    %c2 = arith.constant 2 : index
    %c0_2 = arith.constant 0 : index
    %2 = vector.load %arg6[%c2, %c0_2] : memref<4x96xf32, #tpu.memory_space<vmem>>, vector<1x96xf32>
    %3 = vector.shape_cast %2 : vector<1x96xf32> to vector<1x96xf32>
    %4 = vector.broadcast %3 : vector<1x96xf32> to vector<8x96xf32>
    %c3 = arith.constant 3 : index
    %c0_3 = arith.constant 0 : index
    %5 = vector.load %arg6[%c3, %c0_3] : memref<4x96xf32, #tpu.memory_space<vmem>>, vector<1x4xf32>
    %c0_4 = arith.constant 0 : index
    %c0_5 = arith.constant 0 : index
    %6 = vector.load %arg1[%c0_4, %c0_5] : memref<64x16xf32, #tpu.memory_space<vmem>>, vector<64x16xf32>
    %c0_6 = arith.constant 0 : index
    %c0_7 = arith.constant 0 : index
    %7 = vector.load %arg2[%c0_6, %c0_7] : memref<16x32xf32, #tpu.memory_space<vmem>>, vector<16x32xf32>
    %cst = arith.constant dense<0.000000e+00> : vector<64x32xf32>
    %8 = tpu.matmul %6, %7, %cst {dimension_numbers = #tpu.dot_dimension_numbers<[1], [0], [0], [1], [0, 0, 1, 1], [], []>} : vector<64x16xf32>, vector<16x32xf32>, vector<64x32xf32> -> vector<64x32xf32>
    %9 = vector.broadcast %0 : vector<1x32xf32> to vector<64x32xf32>
    %10 = arith.addf %8, %9 : vector<64x32xf32>
    %cst_8 = arith.constant 0.000000e+00 : f32
    %11 = vector.broadcast %cst_8 : f32 to vector<64x32xf32>
    %12 = arith.maximumf %10, %11 : vector<64x32xf32>
    %c0_9 = arith.constant 0 : index
    %c0_10 = arith.constant 0 : index
    %13 = vector.load %arg3[%c0_9, %c0_10] : memref<32x96xf32, #tpu.memory_space<vmem>>, vector<32x96xf32>
    %cst_11 = arith.constant dense<0.000000e+00> : vector<64x96xf32>
    %14 = tpu.matmul %12, %13, %cst_11 {dimension_numbers = #tpu.dot_dimension_numbers<[1], [0], [0], [1], [0, 0, 1, 1], [], []>} : vector<64x32xf32>, vector<32x96xf32>, vector<64x96xf32> -> vector<64x96xf32>
    %15 = vector.broadcast %1 : vector<1x96xf32> to vector<64x96xf32>
    %16 = arith.addf %14, %15 : vector<64x96xf32>
    %c0_12 = arith.constant 0 : index
    %c0_13 = arith.constant 0 : index
    %17 = vector.load %arg8[%c0_12, %c0_13] : memref<64x96xf32, #tpu.memory_space<vmem>>, vector<64x96xf32>
    tpu.vector_store %arg8[%c0_12, %c0_13], %16 {strides = array<i32>} : memref<64x96xf32, #tpu.memory_space<vmem>>, vector<64x96xf32>,
    %c0_14 = arith.constant 0 : index
    %c0_15 = arith.constant 0 : index
    %18 = vector.load %arg4[%c0_14, %c0_15] : memref<32x96xf32, #tpu.memory_space<vmem>>, vector<32x96xf32>
    %cst_16 = arith.constant 0.000000e+00 : f32
    %19 = vector.broadcast %cst_16 : f32 to vector<8x32xf32>
    %c0_i32 = arith.constant 0 : i32
    %c8_i32 = arith.constant 8 : i32
    %20 = arith.muli %c0_i32, %c8_i32 : i32
    %21 = tpu.assume_multiple %20, 8 : i32
    %22 = arith.index_cast %21 : i32 to index
    %c0_17 = arith.constant 0 : index
    %23 = vector.load %arg8[%22, %c0_17] : memref<64x96xf32, #tpu.memory_space<vmem>>, vector<8x96xf32>
    %cst_18 = arith.constant dense<0.000000e+00> : vector<8x96xf32>
    %24 = tpu.matmul %19, %18, %cst_18 {dimension_numbers = #tpu.dot_dimension_numbers<[1], [0], [0], [1], [0, 0, 1, 1], [], []>} : vector<8x32xf32>, vector<32x96xf32>, vector<8x96xf32> -> vector<8x96xf32>
    %25 = arith.addf %24, %4 : vector<8x96xf32>
    %26 = vector.extract_strided_slice %23 {offsets = [0, 0], sizes = [8, 64], strides = [1, 1]} : vector<8x96xf32> to vector<8x64xf32>
    %27 = vector.extract_strided_slice %25 {offsets = [0, 0], sizes = [8, 64], strides = [1, 1]} : vector<8x96xf32> to vector<8x64xf32>
    %28 = arith.addf %26, %27 : vector<8x64xf32>
    %cst_19 = arith.constant 5.000000e-01 : f32
    %29 = vector.broadcast %cst_19 : f32 to vector<8x64xf32>
    %30 = arith.mulf %29, %28 : vector<8x64xf32>
    %31 = math.tanh %30 : vector<8x64xf32>
    %cst_20 = arith.constant 5.000000e-01 : f32
    %32 = vector.broadcast %cst_20 : f32 to vector<8x64xf32>
    %33 = arith.mulf %32, %31 : vector<8x64xf32>
    %cst_21 = arith.constant 5.000000e-01 : f32
    %34 = vector.broadcast %cst_21 : f32 to vector<8x64xf32>
    %35 = arith.addf %33, %34 : vector<8x64xf32>
    %36 = vector.extract_strided_slice %35 {offsets = [0, 0], sizes = [8, 32], strides = [1, 1]} : vector<8x64xf32> to vector<8x32xf32>
    %37 = vector.extract_strided_slice %35 {offsets = [0, 32], sizes = [8, 32], strides = [1, 1]} : vector<8x64xf32> to vector<8x32xf32>
    %38 = vector.extract_strided_slice %23 {offsets = [0, 64], sizes = [8, 32], strides = [1, 1]} : vector<8x96xf32> to vector<8x32xf32>
    %39 = vector.extract_strided_slice %25 {offsets = [0, 64], sizes = [8, 32], strides = [1, 1]} : vector<8x96xf32> to vector<8x32xf32>
    %40 = arith.mulf %36, %39 : vector<8x32xf32>
    %41 = arith.addf %38, %40 : vector<8x32xf32>
    %42 = math.tanh %41 : vector<8x32xf32>
    %cst_22 = arith.constant 1.000000e+00 : f32
    %43 = vector.broadcast %cst_22 : f32 to vector<8x32xf32>
    %44 = arith.subf %43, %37 : vector<8x32xf32>
    %45 = arith.mulf %44, %42 : vector<8x32xf32>
    %46 = arith.mulf %37, %19 : vector<8x32xf32>
    %47 = arith.addf %45, %46 : vector<8x32xf32>
    %48 = arith.index_cast %21 : i32 to index
    %c0_23 = arith.constant 0 : index
    %49 = vector.load %arg9[%48, %c0_23] : memref<64x32xf32, #tpu.memory_space<vmem>>, vector<8x32xf32>
    tpu.vector_store %arg9[%48, %c0_23], %47 {strides = array<i32>} : memref<64x32xf32, #tpu.memory_space<vmem>>, vector<8x32xf32>,
    %c1_i32 = arith.constant 1 : i32
    %c8_i32_24 = arith.constant 8 : i32
    %50 = arith.muli %c1_i32, %c8_i32_24 : i32
    %51 = tpu.assume_multiple %50, 8 : i32
    %52 = arith.index_cast %51 : i32 to index
    %c0_25 = arith.constant 0 : index
    %53 = vector.load %arg8[%52, %c0_25] : memref<64x96xf32, #tpu.memory_space<vmem>>, vector<8x96xf32>
    %cst_26 = arith.constant dense<0.000000e+00> : vector<8x96xf32>
    %54 = tpu.matmul %47, %18, %cst_26 {dimension_numbers = #tpu.dot_dimension_numbers<[1], [0], [0], [1], [0, 0, 1, 1], [], []>} : vector<8x32xf32>, vector<32x96xf32>, vector<8x96xf32> -> vector<8x96xf32>
    %55 = arith.addf %54, %4 : vector<8x96xf32>
    %56 = vector.extract_strided_slice %53 {offsets = [0, 0], sizes = [8, 64], strides = [1, 1]} : vector<8x96xf32> to vector<8x64xf32>
    %57 = vector.extract_strided_slice %55 {offsets = [0, 0], sizes = [8, 64], strides = [1, 1]} : vector<8x96xf32> to vector<8x64xf32>
    %58 = arith.addf %56, %57 : vector<8x64xf32>
    %cst_27 = arith.constant 5.000000e-01 : f32
    %59 = vector.broadcast %cst_27 : f32 to vector<8x64xf32>
    %60 = arith.mulf %59, %58 : vector<8x64xf32>
    %61 = math.tanh %60 : vector<8x64xf32>
    %cst_28 = arith.constant 5.000000e-01 : f32
    %62 = vector.broadcast %cst_28 : f32 to vector<8x64xf32>
    %63 = arith.mulf %62, %61 : vector<8x64xf32>
    %cst_29 = arith.constant 5.000000e-01 : f32
    %64 = vector.broadcast %cst_29 : f32 to vector<8x64xf32>
    %65 = arith.addf %63, %64 : vector<8x64xf32>
    %66 = vector.extract_strided_slice %65 {offsets = [0, 0], sizes = [8, 32], strides = [1, 1]} : vector<8x64xf32> to vector<8x32xf32>
    %67 = vector.extract_strided_slice %65 {offsets = [0, 32], sizes = [8, 32], strides = [1, 1]} : vector<8x64xf32> to vector<8x32xf32>
    %68 = vector.extract_strided_slice %53 {offsets = [0, 64], sizes = [8, 32], strides = [1, 1]} : vector<8x96xf32> to vector<8x32xf32>
    %69 = vector.extract_strided_slice %55 {offsets = [0, 64], sizes = [8, 32], strides = [1, 1]} : vector<8x96xf32> to vector<8x32xf32>
    %70 = arith.mulf %66, %69 : vector<8x32xf32>
    %71 = arith.addf %68, %70 : vector<8x32xf32>
    %72 = math.tanh %71 : vector<8x32xf32>
    %cst_30 = arith.constant 1.000000e+00 : f32
    %73 = vector.broadcast %cst_30 : f32 to vector<8x32xf32>
    %74 = arith.subf %73, %67 : vector<8x32xf32>
    %75 = arith.mulf %74, %72 : vector<8x32xf32>
    %76 = arith.mulf %67, %47 : vector<8x32xf32>
    %77 = arith.addf %75, %76 : vector<8x32xf32>
    %78 = arith.index_cast %51 : i32 to index
    %c0_31 = arith.constant 0 : index
    %79 = vector.load %arg9[%78, %c0_31] : memref<64x32xf32, #tpu.memory_space<vmem>>, vector<8x32xf32>
    tpu.vector_store %arg9[%78, %c0_31], %77 {strides = array<i32>} : memref<64x32xf32, #tpu.memory_space<vmem>>, vector<8x32xf32>,
    %c2_i32 = arith.constant 2 : i32
    %c8_i32_32 = arith.constant 8 : i32
    %80 = arith.muli %c2_i32, %c8_i32_32 : i32
    %81 = tpu.assume_multiple %80, 8 : i32
    %82 = arith.index_cast %81 : i32 to index
    %c0_33 = arith.constant 0 : index
    %83 = vector.load %arg8[%82, %c0_33] : memref<64x96xf32, #tpu.memory_space<vmem>>, vector<8x96xf32>
    %cst_34 = arith.constant dense<0.000000e+00> : vector<8x96xf32>
    %84 = tpu.matmul %77, %18, %cst_34 {dimension_numbers = #tpu.dot_dimension_numbers<[1], [0], [0], [1], [0, 0, 1, 1], [], []>} : vector<8x32xf32>, vector<32x96xf32>, vector<8x96xf32> -> vector<8x96xf32>
    %85 = arith.addf %84, %4 : vector<8x96xf32>
    %86 = vector.extract_strided_slice %83 {offsets = [0, 0], sizes = [8, 64], strides = [1, 1]} : vector<8x96xf32> to vector<8x64xf32>
    %87 = vector.extract_strided_slice %85 {offsets = [0, 0], sizes = [8, 64], strides = [1, 1]} : vector<8x96xf32> to vector<8x64xf32>
    %88 = arith.addf %86, %87 : vector<8x64xf32>
    %cst_35 = arith.constant 5.000000e-01 : f32
    %89 = vector.broadcast %cst_35 : f32 to vector<8x64xf32>
    %90 = arith.mulf %89, %88 : vector<8x64xf32>
    %91 = math.tanh %90 : vector<8x64xf32>
    %cst_36 = arith.constant 5.000000e-01 : f32
    %92 = vector.broadcast %cst_36 : f32 to vector<8x64xf32>
    %93 = arith.mulf %92, %91 : vector<8x64xf32>
    %cst_37 = arith.constant 5.000000e-01 : f32
    %94 = vector.broadcast %cst_37 : f32 to vector<8x64xf32>
    %95 = arith.addf %93, %94 : vector<8x64xf32>
    %96 = vector.extract_strided_slice %95 {offsets = [0, 0], sizes = [8, 32], strides = [1, 1]} : vector<8x64xf32> to vector<8x32xf32>
    %97 = vector.extract_strided_slice %95 {offsets = [0, 32], sizes = [8, 32], strides = [1, 1]} : vector<8x64xf32> to vector<8x32xf32>
    %98 = vector.extract_strided_slice %83 {offsets = [0, 64], sizes = [8, 32], strides = [1, 1]} : vector<8x96xf32> to vector<8x32xf32>
    %99 = vector.extract_strided_slice %85 {offsets = [0, 64], sizes = [8, 32], strides = [1, 1]} : vector<8x96xf32> to vector<8x32xf32>
    %100 = arith.mulf %96, %99 : vector<8x32xf32>
    %101 = arith.addf %98, %100 : vector<8x32xf32>
    %102 = math.tanh %101 : vector<8x32xf32>
    %cst_38 = arith.constant 1.000000e+00 : f32
    %103 = vector.broadcast %cst_38 : f32 to vector<8x32xf32>
    %104 = arith.subf %103, %97 : vector<8x32xf32>
    %105 = arith.mulf %104, %102 : vector<8x32xf32>
    %106 = arith.mulf %97, %77 : vector<8x32xf32>
    %107 = arith.addf %105, %106 : vector<8x32xf32>
    %108 = arith.index_cast %81 : i32 to index
    %c0_39 = arith.constant 0 : index
    %109 = vector.load %arg9[%108, %c0_39] : memref<64x32xf32, #tpu.memory_space<vmem>>, vector<8x32xf32>
    tpu.vector_store %arg9[%108, %c0_39], %107 {strides = array<i32>} : memref<64x32xf32, #tpu.memory_space<vmem>>, vector<8x32xf32>,
    %c3_i32 = arith.constant 3 : i32
    %c8_i32_40 = arith.constant 8 : i32
    %110 = arith.muli %c3_i32, %c8_i32_40 : i32
    %111 = tpu.assume_multiple %110, 8 : i32
    %112 = arith.index_cast %111 : i32 to index
    %c0_41 = arith.constant 0 : index
    %113 = vector.load %arg8[%112, %c0_41] : memref<64x96xf32, #tpu.memory_space<vmem>>, vector<8x96xf32>
    %cst_42 = arith.constant dense<0.000000e+00> : vector<8x96xf32>
    %114 = tpu.matmul %107, %18, %cst_42 {dimension_numbers = #tpu.dot_dimension_numbers<[1], [0], [0], [1], [0, 0, 1, 1], [], []>} : vector<8x32xf32>, vector<32x96xf32>, vector<8x96xf32> -> vector<8x96xf32>
    %115 = arith.addf %114, %4 : vector<8x96xf32>
    %116 = vector.extract_strided_slice %113 {offsets = [0, 0], sizes = [8, 64], strides = [1, 1]} : vector<8x96xf32> to vector<8x64xf32>
    %117 = vector.extract_strided_slice %115 {offsets = [0, 0], sizes = [8, 64], strides = [1, 1]} : vector<8x96xf32> to vector<8x64xf32>
    %118 = arith.addf %116, %117 : vector<8x64xf32>
    %cst_43 = arith.constant 5.000000e-01 : f32
    %119 = vector.broadcast %cst_43 : f32 to vector<8x64xf32>
    %120 = arith.mulf %119, %118 : vector<8x64xf32>
    %121 = math.tanh %120 : vector<8x64xf32>
    %cst_44 = arith.constant 5.000000e-01 : f32
    %122 = vector.broadcast %cst_44 : f32 to vector<8x64xf32>
    %123 = arith.mulf %122, %121 : vector<8x64xf32>
    %cst_45 = arith.constant 5.000000e-01 : f32
    %124 = vector.broadcast %cst_45 : f32 to vector<8x64xf32>
    %125 = arith.addf %123, %124 : vector<8x64xf32>
    %126 = vector.extract_strided_slice %125 {offsets = [0, 0], sizes = [8, 32], strides = [1, 1]} : vector<8x64xf32> to vector<8x32xf32>
    %127 = vector.extract_strided_slice %125 {offsets = [0, 32], sizes = [8, 32], strides = [1, 1]} : vector<8x64xf32> to vector<8x32xf32>
    %128 = vector.extract_strided_slice %113 {offsets = [0, 64], sizes = [8, 32], strides = [1, 1]} : vector<8x96xf32> to vector<8x32xf32>
    %129 = vector.extract_strided_slice %115 {offsets = [0, 64], sizes = [8, 32], strides = [1, 1]} : vector<8x96xf32> to vector<8x32xf32>
    %130 = arith.mulf %126, %129 : vector<8x32xf32>
    %131 = arith.addf %128, %130 : vector<8x32xf32>
    %132 = math.tanh %131 : vector<8x32xf32>
    %cst_46 = arith.constant 1.000000e+00 : f32
    %133 = vector.broadcast %cst_46 : f32 to vector<8x32xf32>
    %134 = arith.subf %133, %127 : vector<8x32xf32>
    %135 = arith.mulf %134, %132 : vector<8x32xf32>
    %136 = arith.mulf %127, %107 : vector<8x32xf32>
    %137 = arith.addf %135, %136 : vector<8x32xf32>
    %138 = arith.index_cast %111 : i32 to index
    %c0_47 = arith.constant 0 : index
    %139 = vector.load %arg9[%138, %c0_47] : memref<64x32xf32, #tpu.memory_space<vmem>>, vector<8x32xf32>
    tpu.vector_store %arg9[%138, %c0_47], %137 {strides = array<i32>} : memref<64x32xf32, #tpu.memory_space<vmem>>, vector<8x32xf32>,
    %c4_i32 = arith.constant 4 : i32
    %c8_i32_48 = arith.constant 8 : i32
    %140 = arith.muli %c4_i32, %c8_i32_48 : i32
    %141 = tpu.assume_multiple %140, 8 : i32
    %142 = arith.index_cast %141 : i32 to index
    %c0_49 = arith.constant 0 : index
    %143 = vector.load %arg8[%142, %c0_49] : memref<64x96xf32, #tpu.memory_space<vmem>>, vector<8x96xf32>
    %cst_50 = arith.constant dense<0.000000e+00> : vector<8x96xf32>
    %144 = tpu.matmul %137, %18, %cst_50 {dimension_numbers = #tpu.dot_dimension_numbers<[1], [0], [0], [1], [0, 0, 1, 1], [], []>} : vector<8x32xf32>, vector<32x96xf32>, vector<8x96xf32> -> vector<8x96xf32>
    %145 = arith.addf %144, %4 : vector<8x96xf32>
    %146 = vector.extract_strided_slice %143 {offsets = [0, 0], sizes = [8, 64], strides = [1, 1]} : vector<8x96xf32> to vector<8x64xf32>
    %147 = vector.extract_strided_slice %145 {offsets = [0, 0], sizes = [8, 64], strides = [1, 1]} : vector<8x96xf32> to vector<8x64xf32>
    %148 = arith.addf %146, %147 : vector<8x64xf32>
    %cst_51 = arith.constant 5.000000e-01 : f32
    %149 = vector.broadcast %cst_51 : f32 to vector<8x64xf32>
    %150 = arith.mulf %149, %148 : vector<8x64xf32>
    %151 = math.tanh %150 : vector<8x64xf32>
    %cst_52 = arith.constant 5.000000e-01 : f32
    %152 = vector.broadcast %cst_52 : f32 to vector<8x64xf32>
    %153 = arith.mulf %152, %151 : vector<8x64xf32>
    %cst_53 = arith.constant 5.000000e-01 : f32
    %154 = vector.broadcast %cst_53 : f32 to vector<8x64xf32>
    %155 = arith.addf %153, %154 : vector<8x64xf32>
    %156 = vector.extract_strided_slice %155 {offsets = [0, 0], sizes = [8, 32], strides = [1, 1]} : vector<8x64xf32> to vector<8x32xf32>
    %157 = vector.extract_strided_slice %155 {offsets = [0, 32], sizes = [8, 32], strides = [1, 1]} : vector<8x64xf32> to vector<8x32xf32>
    %158 = vector.extract_strided_slice %143 {offsets = [0, 64], sizes = [8, 32], strides = [1, 1]} : vector<8x96xf32> to vector<8x32xf32>
    %159 = vector.extract_strided_slice %145 {offsets = [0, 64], sizes = [8, 32], strides = [1, 1]} : vector<8x96xf32> to vector<8x32xf32>
    %160 = arith.mulf %156, %159 : vector<8x32xf32>
    %161 = arith.addf %158, %160 : vector<8x32xf32>
    %162 = math.tanh %161 : vector<8x32xf32>
    %cst_54 = arith.constant 1.000000e+00 : f32
    %163 = vector.broadcast %cst_54 : f32 to vector<8x32xf32>
    %164 = arith.subf %163, %157 : vector<8x32xf32>
    %165 = arith.mulf %164, %162 : vector<8x32xf32>
    %166 = arith.mulf %157, %137 : vector<8x32xf32>
    %167 = arith.addf %165, %166 : vector<8x32xf32>
    %168 = arith.index_cast %141 : i32 to index
    %c0_55 = arith.constant 0 : index
    %169 = vector.load %arg9[%168, %c0_55] : memref<64x32xf32, #tpu.memory_space<vmem>>, vector<8x32xf32>
    tpu.vector_store %arg9[%168, %c0_55], %167 {strides = array<i32>} : memref<64x32xf32, #tpu.memory_space<vmem>>, vector<8x32xf32>,
    %c5_i32 = arith.constant 5 : i32
    %c8_i32_56 = arith.constant 8 : i32
    %170 = arith.muli %c5_i32, %c8_i32_56 : i32
    %171 = tpu.assume_multiple %170, 8 : i32
    %172 = arith.index_cast %171 : i32 to index
    %c0_57 = arith.constant 0 : index
    %173 = vector.load %arg8[%172, %c0_57] : memref<64x96xf32, #tpu.memory_space<vmem>>, vector<8x96xf32>
    %cst_58 = arith.constant dense<0.000000e+00> : vector<8x96xf32>
    %174 = tpu.matmul %167, %18, %cst_58 {dimension_numbers = #tpu.dot_dimension_numbers<[1], [0], [0], [1], [0, 0, 1, 1], [], []>} : vector<8x32xf32>, vector<32x96xf32>, vector<8x96xf32> -> vector<8x96xf32>
    %175 = arith.addf %174, %4 : vector<8x96xf32>
    %176 = vector.extract_strided_slice %173 {offsets = [0, 0], sizes = [8, 64], strides = [1, 1]} : vector<8x96xf32> to vector<8x64xf32>
    %177 = vector.extract_strided_slice %175 {offsets = [0, 0], sizes = [8, 64], strides = [1, 1]} : vector<8x96xf32> to vector<8x64xf32>
    %178 = arith.addf %176, %177 : vector<8x64xf32>
    %cst_59 = arith.constant 5.000000e-01 : f32
    %179 = vector.broadcast %cst_59 : f32 to vector<8x64xf32>
    %180 = arith.mulf %179, %178 : vector<8x64xf32>
    %181 = math.tanh %180 : vector<8x64xf32>
    %cst_60 = arith.constant 5.000000e-01 : f32
    %182 = vector.broadcast %cst_60 : f32 to vector<8x64xf32>
    %183 = arith.mulf %182, %181 : vector<8x64xf32>
    %cst_61 = arith.constant 5.000000e-01 : f32
    %184 = vector.broadcast %cst_61 : f32 to vector<8x64xf32>
    %185 = arith.addf %183, %184 : vector<8x64xf32>
    %186 = vector.extract_strided_slice %185 {offsets = [0, 0], sizes = [8, 32], strides = [1, 1]} : vector<8x64xf32> to vector<8x32xf32>
    %187 = vector.extract_strided_slice %185 {offsets = [0, 32], sizes = [8, 32], strides = [1, 1]} : vector<8x64xf32> to vector<8x32xf32>
    %188 = vector.extract_strided_slice %173 {offsets = [0, 64], sizes = [8, 32], strides = [1, 1]} : vector<8x96xf32> to vector<8x32xf32>
    %189 = vector.extract_strided_slice %175 {offsets = [0, 64], sizes = [8, 32], strides = [1, 1]} : vector<8x96xf32> to vector<8x32xf32>
    %190 = arith.mulf %186, %189 : vector<8x32xf32>
    %191 = arith.addf %188, %190 : vector<8x32xf32>
    %192 = math.tanh %191 : vector<8x32xf32>
    %cst_62 = arith.constant 1.000000e+00 : f32
    %193 = vector.broadcast %cst_62 : f32 to vector<8x32xf32>
    %194 = arith.subf %193, %187 : vector<8x32xf32>
    %195 = arith.mulf %194, %192 : vector<8x32xf32>
    %196 = arith.mulf %187, %167 : vector<8x32xf32>
    %197 = arith.addf %195, %196 : vector<8x32xf32>
    %198 = arith.index_cast %171 : i32 to index
    %c0_63 = arith.constant 0 : index
    %199 = vector.load %arg9[%198, %c0_63] : memref<64x32xf32, #tpu.memory_space<vmem>>, vector<8x32xf32>
    tpu.vector_store %arg9[%198, %c0_63], %197 {strides = array<i32>} : memref<64x32xf32, #tpu.memory_space<vmem>>, vector<8x32xf32>,
    %c6_i32 = arith.constant 6 : i32
    %c8_i32_64 = arith.constant 8 : i32
    %200 = arith.muli %c6_i32, %c8_i32_64 : i32
    %201 = tpu.assume_multiple %200, 8 : i32
    %202 = arith.index_cast %201 : i32 to index
    %c0_65 = arith.constant 0 : index
    %203 = vector.load %arg8[%202, %c0_65] : memref<64x96xf32, #tpu.memory_space<vmem>>, vector<8x96xf32>
    %cst_66 = arith.constant dense<0.000000e+00> : vector<8x96xf32>
    %204 = tpu.matmul %197, %18, %cst_66 {dimension_numbers = #tpu.dot_dimension_numbers<[1], [0], [0], [1], [0, 0, 1, 1], [], []>} : vector<8x32xf32>, vector<32x96xf32>, vector<8x96xf32> -> vector<8x96xf32>
    %205 = arith.addf %204, %4 : vector<8x96xf32>
    %206 = vector.extract_strided_slice %203 {offsets = [0, 0], sizes = [8, 64], strides = [1, 1]} : vector<8x96xf32> to vector<8x64xf32>
    %207 = vector.extract_strided_slice %205 {offsets = [0, 0], sizes = [8, 64], strides = [1, 1]} : vector<8x96xf32> to vector<8x64xf32>
    %208 = arith.addf %206, %207 : vector<8x64xf32>
    %cst_67 = arith.constant 5.000000e-01 : f32
    %209 = vector.broadcast %cst_67 : f32 to vector<8x64xf32>
    %210 = arith.mulf %209, %208 : vector<8x64xf32>
    %211 = math.tanh %210 : vector<8x64xf32>
    %cst_68 = arith.constant 5.000000e-01 : f32
    %212 = vector.broadcast %cst_68 : f32 to vector<8x64xf32>
    %213 = arith.mulf %212, %211 : vector<8x64xf32>
    %cst_69 = arith.constant 5.000000e-01 : f32
    %214 = vector.broadcast %cst_69 : f32 to vector<8x64xf32>
    %215 = arith.addf %213, %214 : vector<8x64xf32>
    %216 = vector.extract_strided_slice %215 {offsets = [0, 0], sizes = [8, 32], strides = [1, 1]} : vector<8x64xf32> to vector<8x32xf32>
    %217 = vector.extract_strided_slice %215 {offsets = [0, 32], sizes = [8, 32], strides = [1, 1]} : vector<8x64xf32> to vector<8x32xf32>
    %218 = vector.extract_strided_slice %203 {offsets = [0, 64], sizes = [8, 32], strides = [1, 1]} : vector<8x96xf32> to vector<8x32xf32>
    %219 = vector.extract_strided_slice %205 {offsets = [0, 64], sizes = [8, 32], strides = [1, 1]} : vector<8x96xf32> to vector<8x32xf32>
    %220 = arith.mulf %216, %219 : vector<8x32xf32>
    %221 = arith.addf %218, %220 : vector<8x32xf32>
    %222 = math.tanh %221 : vector<8x32xf32>
    %cst_70 = arith.constant 1.000000e+00 : f32
    %223 = vector.broadcast %cst_70 : f32 to vector<8x32xf32>
    %224 = arith.subf %223, %217 : vector<8x32xf32>
    %225 = arith.mulf %224, %222 : vector<8x32xf32>
    %226 = arith.mulf %217, %197 : vector<8x32xf32>
    %227 = arith.addf %225, %226 : vector<8x32xf32>
    %228 = arith.index_cast %201 : i32 to index
    %c0_71 = arith.constant 0 : index
    %229 = vector.load %arg9[%228, %c0_71] : memref<64x32xf32, #tpu.memory_space<vmem>>, vector<8x32xf32>
    tpu.vector_store %arg9[%228, %c0_71], %227 {strides = array<i32>} : memref<64x32xf32, #tpu.memory_space<vmem>>, vector<8x32xf32>,
    %c7_i32 = arith.constant 7 : i32
    %c8_i32_72 = arith.constant 8 : i32
    %230 = arith.muli %c7_i32, %c8_i32_72 : i32
    %231 = tpu.assume_multiple %230, 8 : i32
    %232 = arith.index_cast %231 : i32 to index
    %c0_73 = arith.constant 0 : index
    %233 = vector.load %arg8[%232, %c0_73] : memref<64x96xf32, #tpu.memory_space<vmem>>, vector<8x96xf32>
    %cst_74 = arith.constant dense<0.000000e+00> : vector<8x96xf32>
    %234 = tpu.matmul %227, %18, %cst_74 {dimension_numbers = #tpu.dot_dimension_numbers<[1], [0], [0], [1], [0, 0, 1, 1], [], []>} : vector<8x32xf32>, vector<32x96xf32>, vector<8x96xf32> -> vector<8x96xf32>
    %235 = arith.addf %234, %4 : vector<8x96xf32>
    %236 = vector.extract_strided_slice %233 {offsets = [0, 0], sizes = [8, 64], strides = [1, 1]} : vector<8x96xf32> to vector<8x64xf32>
    %237 = vector.extract_strided_slice %235 {offsets = [0, 0], sizes = [8, 64], strides = [1, 1]} : vector<8x96xf32> to vector<8x64xf32>
    %238 = arith.addf %236, %237 : vector<8x64xf32>
    %cst_75 = arith.constant 5.000000e-01 : f32
    %239 = vector.broadcast %cst_75 : f32 to vector<8x64xf32>
    %240 = arith.mulf %239, %238 : vector<8x64xf32>
    %241 = math.tanh %240 : vector<8x64xf32>
    %cst_76 = arith.constant 5.000000e-01 : f32
    %242 = vector.broadcast %cst_76 : f32 to vector<8x64xf32>
    %243 = arith.mulf %242, %241 : vector<8x64xf32>
    %cst_77 = arith.constant 5.000000e-01 : f32
    %244 = vector.broadcast %cst_77 : f32 to vector<8x64xf32>
    %245 = arith.addf %243, %244 : vector<8x64xf32>
    %246 = vector.extract_strided_slice %245 {offsets = [0, 0], sizes = [8, 32], strides = [1, 1]} : vector<8x64xf32> to vector<8x32xf32>
    %247 = vector.extract_strided_slice %245 {offsets = [0, 32], sizes = [8, 32], strides = [1, 1]} : vector<8x64xf32> to vector<8x32xf32>
    %248 = vector.extract_strided_slice %233 {offsets = [0, 64], sizes = [8, 32], strides = [1, 1]} : vector<8x96xf32> to vector<8x32xf32>
    %249 = vector.extract_strided_slice %235 {offsets = [0, 64], sizes = [8, 32], strides = [1, 1]} : vector<8x96xf32> to vector<8x32xf32>
    %250 = arith.mulf %246, %249 : vector<8x32xf32>
    %251 = arith.addf %248, %250 : vector<8x32xf32>
    %252 = math.tanh %251 : vector<8x32xf32>
    %cst_78 = arith.constant 1.000000e+00 : f32
    %253 = vector.broadcast %cst_78 : f32 to vector<8x32xf32>
    %254 = arith.subf %253, %247 : vector<8x32xf32>
    %255 = arith.mulf %254, %252 : vector<8x32xf32>
    %256 = arith.mulf %247, %227 : vector<8x32xf32>
    %257 = arith.addf %255, %256 : vector<8x32xf32>
    %258 = arith.index_cast %231 : i32 to index
    %c0_79 = arith.constant 0 : index
    %259 = vector.load %arg9[%258, %c0_79] : memref<64x32xf32, #tpu.memory_space<vmem>>, vector<8x32xf32>
    tpu.vector_store %arg9[%258, %c0_79], %257 {strides = array<i32>} : memref<64x32xf32, #tpu.memory_space<vmem>>, vector<8x32xf32>,
    %c8_i32_80 = arith.constant 8 : i32
    %c0_81 = arith.constant 0 : index
    %c0_82 = arith.constant 0 : index
    %260 = vector.load %arg9[%c0_81, %c0_82] : memref<64x32xf32, #tpu.memory_space<vmem>>, vector<64x32xf32>
    %c0_83 = arith.constant 0 : index
    %c0_84 = arith.constant 0 : index
    %261 = vector.load %arg5[%c0_83, %c0_84] : memref<32x4xf32, #tpu.memory_space<vmem>>, vector<32x4xf32>
    %cst_85 = arith.constant dense<0.000000e+00> : vector<64x4xf32>
    %262 = tpu.matmul %260, %261, %cst_85 {dimension_numbers = #tpu.dot_dimension_numbers<[1], [0], [0], [1], [0, 0, 1, 1], [], []>} : vector<64x32xf32>, vector<32x4xf32>, vector<64x4xf32> -> vector<64x4xf32>
    %263 = vector.broadcast %5 : vector<1x4xf32> to vector<64x4xf32>
    %264 = arith.addf %262, %263 : vector<64x4xf32>
    %c0_86 = arith.constant 0 : index
    %c0_87 = arith.constant 0 : index
    %265 = vector.load %arg7[%c0_86, %c0_87] : memref<64x4xf32, #tpu.memory_space<vmem>>, vector<64x4xf32>
    tpu.vector_store %arg7[%c0_86, %c0_87], %264 {strides = array<i32>} : memref<64x4xf32, #tpu.memory_space<vmem>>, vector<64x4xf32>,
    return
  }
  func.func @transform_0(%arg0: i32) -> (i32, i32) {
    %c0_i32 = arith.constant 0 : i32
    %c0_i32_0 = arith.constant 0 : i32
    return %arg0, %c0_i32 : i32, i32
  }
  func.func @transform_1(%arg0: i32) -> (i32, i32) {
    %c0_i32 = arith.constant 0 : i32
    %c0_i32_0 = arith.constant 0 : i32
    %c0_i32_1 = arith.constant 0 : i32
    return %c0_i32, %c0_i32_0 : i32, i32
  }
  func.func @transform_2(%arg0: i32) -> (i32, i32) {
    %c0_i32 = arith.constant 0 : i32
    %c0_i32_0 = arith.constant 0 : i32
    %c0_i32_1 = arith.constant 0 : i32
    return %c0_i32, %c0_i32_0 : i32, i32
  }
  func.func @transform_3(%arg0: i32) -> (i32, i32) {
    %c0_i32 = arith.constant 0 : i32
    %c0_i32_0 = arith.constant 0 : i32
    %c0_i32_1 = arith.constant 0 : i32
    return %c0_i32, %c0_i32_0 : i32, i32
  }
  func.func @transform_4(%arg0: i32) -> (i32, i32) {
    %c0_i32 = arith.constant 0 : i32
    %c0_i32_0 = arith.constant 0 : i32
    %c0_i32_1 = arith.constant 0 : i32
    return %c0_i32, %c0_i32_0 : i32, i32
  }
  func.func @transform_5(%arg0: i32) -> (i32, i32) {
    %c0_i32 = arith.constant 0 : i32
    %c0_i32_0 = arith.constant 0 : i32
    %c0_i32_1 = arith.constant 0 : i32
    return %c0_i32, %c0_i32_0 : i32, i32
  }
  func.func @transform_6(%arg0: i32) -> (i32, i32) {
    %c0_i32 = arith.constant 0 : i32
    %c0_i32_0 = arith.constant 0 : i32
    return %arg0, %c0_i32 : i32, i32
  }
}

</mosaic_0001>

<llo_original>
// kernel: tpu_custom_call.1
$region0: #{tpu_custom_call.1}
  #allocation0 [shape = 'u32[]', space=smem, size = 0x4, offset = 0x4, fixed_abs, tag = 'smem constant byte address 0x4 - core index']
  #allocation1 [shape = 'u32[144,128]{1,0:T(1,128)}', space=vmem, size = 0x12000, scoped, tag = 'internal scratch']
  #allocation2 [shape = 'f32[64,96]{1,0:T(8,128)}', space=vmem, size = 0x8000, scoped, tag = 'scratch operand']
  #allocation3 [shape = 'f32[64,32]{1,0:T(8,128)}', space=vmem, size = 0x8000, scoped, tag = 'scratch operand']
  %s0 = inlined_call_operand.vmem [shape: f32[64,16], index: 0, kind: input, shape index: {}]
  %s1 = inlined_call_operand.vmem [shape: f32[16,32], index: 1, kind: input, shape index: {}]
  %s2 = inlined_call_operand.vmem [shape: f32[32,96], index: 2, kind: input, shape index: {}]
  %s3 = inlined_call_operand.vmem [shape: f32[32,96], index: 3, kind: input, shape index: {}]
  %s4 = inlined_call_operand.vmem [shape: f32[32,4], index: 4, kind: input, shape index: {}]
  %s5 = inlined_call_operand.vmem [shape: f32[4,96], index: 5, kind: input, shape index: {}]
  %s6 = inlined_call_operand.vmem [shape: f32[64,4], index: 6, kind: output, shape index: {}]
  %s7 = sld [smem:[#allocation0]]
  $region34: #{tpu_custom_call.1} parent=0
    _
  %s9 = ssub.s32 1, %s7
  %s10 = scalar_select 0, %s9, %s7
  // Predicated region
  $region2: #{tpu_custom_call.1} parent=0 // pred_check
    _
  $region3: #{tpu_custom_call.1} parent=0 // pred_check_branch
    %12 = sbr.rel (0) target = $region5
  $region4: #{tpu_custom_call.1} parent=0 // pred_region
    _
  $region5: #{tpu_custom_call.1} parent=0 // pred_fallthru
    _
  // Predicated region
  $region6: #{tpu_custom_call.1} parent=0 // pred_check
    _
  $region7: #{tpu_custom_call.1} parent=0 // pred_check_branch
    %14 = sbr.rel (0) target = $region9
  $region8: #{tpu_custom_call.1} parent=0 // pred_region
    _
  $region9: #{tpu_custom_call.1} parent=0 // pred_fallthru
    _
  // Predicated region
  $region10: #{tpu_custom_call.1} parent=0 // pred_check
    _
  $region11: #{tpu_custom_call.1} parent=0 // pred_check_branch
    %16 = sbr.rel (0) target = $region13
  $region12: #{tpu_custom_call.1} parent=0 // pred_region
    _
  $region13: #{tpu_custom_call.1} parent=0 // pred_fallthru
    _
  // Predicated region
  $region14: #{tpu_custom_call.1} parent=0 // pred_check
    _
  $region15: #{tpu_custom_call.1} parent=0 // pred_check_branch
    %18 = sbr.rel (0) target = $region17
  $region16: #{tpu_custom_call.1} parent=0 // pred_region
    _
  $region17: #{tpu_custom_call.1} parent=0 // pred_fallthru
    _
  // Predicated region
  $region18: #{tpu_custom_call.1} parent=0 // pred_check
    _
  $region19: #{tpu_custom_call.1} parent=0 // pred_check_branch
    %20 = sbr.rel (0) target = $region21
  $region20: #{tpu_custom_call.1} parent=0 // pred_region
    _
  $region21: #{tpu_custom_call.1} parent=0 // pred_fallthru
    _
  // Predicated region
  $region22: #{tpu_custom_call.1} parent=0 // pred_check
    _
  $region23: #{tpu_custom_call.1} parent=0 // pred_check_branch
    %22 = sbr.rel (0) target = $region25
  $region24: #{tpu_custom_call.1} parent=0 // pred_region
    _
  $region25: #{tpu_custom_call.1} parent=0 // pred_fallthru
    _
  %v23 = vld [vmem:[%s5] sm:$0x1]
  %v24 = vld [vmem:[%s5 + $0x1] sm:$0x1]
  %v25 = vld [vmem:[%s5 + $0x2] sm:$0x1]
  %v26 = vlaneseq
  %v27 = vshrl.u32 %v26, 7
  %v28 = vsub.s32 0, %v27
  %v29 = vrot.slane %v25, %v28
  %v30 = vld [vmem:[%s5 + $0x3] sm:$0x1]
  %v31 = vld [vmem:[%s0] sm:$0xff]
  %v32 = vld [vmem:[%s0 + $0x8] sm:$0xff]
  %v33 = vld [vmem:[%s0 + $0x10] sm:$0xff]
  %v34 = vld [vmem:[%s0 + $0x18] sm:$0xff]
  %v35 = vld [vmem:[%s0 + $0x20] sm:$0xff]
  %v36 = vld [vmem:[%s0 + $0x28] sm:$0xff]
  %v37 = vld [vmem:[%s0 + $0x30] sm:$0xff]
  %v38 = vld [vmem:[%s0 + $0x38] sm:$0xff]
  %v39 = vld [vmem:[%s1] sm:$0xff]
  %v40 = vld [vmem:[%s1 + $0x8] sm:$0xff]
  %v41 = vlaneseq
  %v42 = vshrl.u32 %v41, 7
  %v43 = vsub.s32 0, %v42
  %v44 = vrot.slane %v23, %v43
  %vm45 = vcmask 130048
  %v47 = vsel %vm45, %v31, 0
  %v50 = vsel %vm45, %v32, 0
  %v53 = vsel %vm45, %v33, 0
  %v56 = vsel %vm45, %v34, 0
  %v59 = vsel %vm45, %v35, 0
  %v62 = vsel %vm45, %v36, 0
  %v65 = vsel %vm45, %v37, 0
  %v68 = vsel %vm45, %v38, 0
  %70 = vmatprep.subr.mxu0 0.0
  %71 = vmatpush1.msra.mxu0 %v39
  %72 = vmatprep.subr.mxu0 0.0
  %73 = vmatpush1.msra.mxu0 %v40
  %74 = vmatprep.subr.mxu0 0.0
  %75 = vmatpush1.msra.mxu0 0.0
  %76 = vmatprep.subr.mxu0 0.0
  %77 = vmatpush1.msra.mxu0 0.0
  %78 = vmatprep.subr.mxu0 0.0
  %79 = vmatpush1.msra.mxu0 0.0
  %80 = vmatprep.subr.mxu0 0.0
  %81 = vmatpush1.msra.mxu0 0.0
  %82 = vmatprep.subr.mxu0 0.0
  %83 = vmatpush1.msra.mxu0 0.0
  %84 = vmatprep.subr.mxu0 0.0
  %85 = vmatpush1.msra.mxu0 0.0
  %86 = vmatprep.subr.mxu0 0.0
  %87 = vmatpush1.msra.mxu0 0.0
  %88 = vmatprep.subr.mxu0 0.0
  %89 = vmatpush1.msra.mxu0 0.0
  %90 = vmatprep.subr.mxu0 0.0
  %91 = vmatpush1.msra.mxu0 0.0
  %92 = vmatprep.subr.mxu0 0.0
  %93 = vmatpush1.msra.mxu0 0.0
  %94 = vmatprep.subr.mxu0 0.0
  %95 = vmatpush1.msra.mxu0 0.0
  %96 = vmatprep.subr.mxu0 0.0
  %97 = vmatpush1.msra.mxu0 0.0
  %98 = vmatprep.subr.mxu0 0.0
  %99 = vmatpush1.msra.mxu0 0.0
  %100 = vmatprep.subr.mxu0 0.0
  %101 = vmatpush1.msra.mxu0 0.0
  %102 = vmatprep.subr.mxu0 0.0
  %103 = vmatpush1.msra.mxu0 0.0
  %104 = vmatprep.subr.mxu0 0.0
  %105 = vmatpush1.msra.mxu0 0.0
  %106 = vmatprep.subr.mxu0 0.0
  %107 = vmatpush1.msra.mxu0 0.0
  %108 = vmatprep.subr.mxu0 0.0
  %109 = vmatpush1.msra.mxu0 0.0
  %110 = vmatprep.subr.mxu0 0.0
  %111 = vmatpush1.msra.mxu0 0.0
  %112 = vmatprep.subr.mxu0 0.0
  %113 = vmatpush1.msra.mxu0 0.0
  %114 = vmatprep.subr.mxu0 0.0
  %115 = vmatpush1.msra.mxu0 0.0
  %116 = vmatprep.subr.mxu0 0.0
  %117 = vmatpush1.msra.mxu0 0.0
  %118 = vmatprep.subr.mxu0 0.0
  %119 = vmatpush1.msra.mxu0 0.0
  %120 = vmatprep.subr.mxu0 0.0
  %121 = vmatpush1.msra.mxu0 0.0
  %122 = vmatprep.subr.mxu0 0.0
  %123 = vmatpush1.msra.mxu0 0.0
  %124 = vmatprep.subr.mxu0 0.0
  %125 = vmatpush1.msra.mxu0 0.0
  %126 = vmatprep.subr.mxu0 0.0
  %127 = vmatpush1.msra.mxu0 0.0
  %128 = vmatprep.subr.mxu0 0.0
  %129 = vmatpush1.msra.mxu0 0.0
  %130 = vmatprep.subr.mxu0 0.0
  %131 = vmatpush1.msra.mxu0 0.0
  %132 = vmatprep.subr.mxu0 0.0
  %133 = vmatpush1.msra.mxu0 0.0
  %134 = vmatprep.mubr.f32.mxu0 0.0
  %135 = vmatmul.mubr.f32.gmra.mrb[0].mxu0 %v47
  %v136 = vpop.f32.mrb[0].mxu0
  %v137 = vadd.f32 %v44, %v136
  %v138 = vpop.f32.mrb[0].mxu0
  %139 = vmatprep.mubr.f32.mxu0 0.0
  %140 = vmatmul.mubr.f32.gmra.mrb[0].mxu0 %v50
  %v141 = vpop.f32.mrb[0].mxu0
  %v142 = vadd.f32 %v44, %v141
  %v143 = vpop.f32.mrb[0].mxu0
  %144 = vmatprep.mubr.f32.mxu0 0.0
  %145 = vmatmul.mubr.f32.gmra.mrb[0].mxu0 %v53
  %v146 = vpop.f32.mrb[0].mxu0
  %v147 = vadd.f32 %v44, %v146
  %v148 = vpop.f32.mrb[0].mxu0
  %149 = vmatprep.mubr.f32.mxu0 0.0
  %150 = vmatmul.mubr.f32.gmra.mrb[0].mxu0 %v56
  %v151 = vpop.f32.mrb[0].mxu0
  %v152 = vadd.f32 %v44, %v151
  %v153 = vpop.f32.mrb[0].mxu0
  %154 = vmatprep.mubr.f32.mxu0 0.0
  %155 = vmatmul.mubr.f32.gmra.mrb[0].mxu0 %v59
  %v156 = vpop.f32.mrb[0].mxu0
  %v157 = vadd.f32 %v44, %v156
  %v158 = vpop.f32.mrb[0].mxu0
  %159 = vmatprep.mubr.f32.mxu0 0.0
  %160 = vmatmul.mubr.f32.gmra.mrb[0].mxu0 %v62
  %v161 = vpop.f32.mrb[0].mxu0
  %v162 = vadd.f32 %v44, %v161
  %v163 = vpop.f32.mrb[0].mxu0
  %164 = vmatprep.mubr.f32.mxu0 0.0
  %165 = vmatmul.mubr.f32.gmra.mrb[0].mxu0 %v65
  %v166 = vpop.f32.mrb[0].mxu0
  %v167 = vadd.f32 %v44, %v166
  %v168 = vpop.f32.mrb[0].mxu0
  %169 = vmatprep.mubr.f32.mxu0 0.0
  %170 = vmatmul.mubr.f32.gmra.mrb[0].mxu0 %v68
  %v171 = vpop.f32.mrb[0].mxu0
  %v172 = vadd.f32 %v44, %v171
  %v173 = vpop.f32.mrb[0].mxu0
  %174 = vdwg.mxu0
  %v175 = vmax.f32 %v137, 0.0
  %v176 = vmax.f32 %v142, 0.0
  %v177 = vmax.f32 %v147, 0.0
  %v178 = vmax.f32 %v152, 0.0
  %v179 = vmax.f32 %v157, 0.0
  %v180 = vmax.f32 %v162, 0.0
  %v181 = vmax.f32 %v167, 0.0
  %v182 = vmax.f32 %v172, 0.0
  %v183 = vld [vmem:[%s2] sm:$0xff]
  %v184 = vld [vmem:[%s2 + $0x8] sm:$0xff]
  %v185 = vld [vmem:[%s2 + $0x10] sm:$0xff]
  %v186 = vld [vmem:[%s2 + $0x18] sm:$0xff]
  %v187 = vlaneseq
  %v188 = vshrl.u32 %v187, 7
  %v189 = vsub.s32 0, %v188
  %v190 = vrot.slane %v24, %v189
  %vm191 = vcmask 261120
  %v193 = vsel %vm191, %v175, 0
  %v196 = vsel %vm191, %v176, 0
  %v199 = vsel %vm191, %v177, 0
  %v202 = vsel %vm191, %v178, 0
  %v205 = vsel %vm191, %v179, 0
  %v208 = vsel %vm191, %v180, 0
  %v211 = vsel %vm191, %v181, 0
  %v214 = vsel %vm191, %v182, 0
  %216 = vmatprep.subr.mxu0 0.0
  %217 = vmatpush1.msra.mxu0 %v183
  %218 = vmatprep.subr.mxu0 0.0
  %219 = vmatpush1.msra.mxu0 %v184
  %220 = vmatprep.subr.mxu0 0.0
  %221 = vmatpush1.msra.mxu0 %v185
  %222 = vmatprep.subr.mxu0 0.0
  %223 = vmatpush1.msra.mxu0 %v186
  %224 = vmatprep.subr.mxu0 0.0
  %225 = vmatpush1.msra.mxu0 0.0
  %226 = vmatprep.subr.mxu0 0.0
  %227 = vmatpush1.msra.mxu0 0.0
  %228 = vmatprep.subr.mxu0 0.0
  %229 = vmatpush1.msra.mxu0 0.0
  %230 = vmatprep.subr.mxu0 0.0
  %231 = vmatpush1.msra.mxu0 0.0
  %232 = vmatprep.subr.mxu0 0.0
  %233 = vmatpush1.msra.mxu0 0.0
  %234 = vmatprep.subr.mxu0 0.0
  %235 = vmatpush1.msra.mxu0 0.0
  %236 = vmatprep.subr.mxu0 0.0
  %237 = vmatpush1.msra.mxu0 0.0
  %238 = vmatprep.subr.mxu0 0.0
  %239 = vmatpush1.msra.mxu0 0.0
  %240 = vmatprep.subr.mxu0 0.0
  %241 = vmatpush1.msra.mxu0 0.0
  %242 = vmatprep.subr.mxu0 0.0
  %243 = vmatpush1.msra.mxu0 0.0
  %244 = vmatprep.subr.mxu0 0.0
  %245 = vmatpush1.msra.mxu0 0.0
  %246 = vmatprep.subr.mxu0 0.0
  %247 = vmatpush1.msra.mxu0 0.0
  %248 = vmatprep.subr.mxu0 0.0
  %249 = vmatpush1.msra.mxu0 0.0
  %250 = vmatprep.subr.mxu0 0.0
  %251 = vmatpush1.msra.mxu0 0.0
  %252 = vmatprep.subr.mxu0 0.0
  %253 = vmatpush1.msra.mxu0 0.0
  %254 = vmatprep.subr.mxu0 0.0
  %255 = vmatpush1.msra.mxu0 0.0
  %256 = vmatprep.subr.mxu0 0.0
  %257 = vmatpush1.msra.mxu0 0.0
  %258 = vmatprep.subr.mxu0 0.0
  %259 = vmatpush1.msra.mxu0 0.0
  %260 = vmatprep.subr.mxu0 0.0
  %261 = vmatpush1.msra.mxu0 0.0
  %262 = vmatprep.subr.mxu0 0.0
  %263 = vmatpush1.msra.mxu0 0.0
  %264 = vmatprep.subr.mxu0 0.0
  %265 = vmatpush1.msra.mxu0 0.0
  %266 = vmatprep.subr.mxu0 0.0
  %267 = vmatpush1.msra.mxu0 0.0
  %268 = vmatprep.subr.mxu0 0.0
  %269 = vmatpush1.msra.mxu0 0.0
  %270 = vmatprep.subr.mxu0 0.0
  %271 = vmatpush1.msra.mxu0 0.0
  %272 = vmatprep.subr.mxu0 0.0
  %273 = vmatpush1.msra.mxu0 0.0
  %274 = vmatprep.subr.mxu0 0.0
  %275 = vmatpush1.msra.mxu0 0.0
  %276 = vmatprep.subr.mxu0 0.0
  %277 = vmatpush1.msra.mxu0 0.0
  %278 = vmatprep.subr.mxu0 0.0
  %279 = vmatpush1.msra.mxu0 0.0
  %280 = vmatprep.mubr.f32.mxu0 0.0
  %281 = vmatmul.mubr.f32.gmra.mrb[0].mxu0 %v193
  %v282 = vpop.f32.mrb[0].mxu0
  %v283 = vadd.f32 %v190, %v282
  %v284 = vpop.f32.mrb[0].mxu0
  %285 = vmatprep.mubr.f32.mxu0 0.0
  %286 = vmatmul.mubr.f32.gmra.mrb[0].mxu0 %v196
  %v287 = vpop.f32.mrb[0].mxu0
  %v288 = vadd.f32 %v190, %v287
  %v289 = vpop.f32.mrb[0].mxu0
  %290 = vmatprep.mubr.f32.mxu0 0.0
  %291 = vmatmul.mubr.f32.gmra.mrb[0].mxu0 %v199
  %v292 = vpop.f32.mrb[0].mxu0
  %v293 = vadd.f32 %v190, %v292
  %v294 = vpop.f32.mrb[0].mxu0
  %295 = vmatprep.mubr.f32.mxu0 0.0
  %296 = vmatmul.mubr.f32.gmra.mrb[0].mxu0 %v202
  %v297 = vpop.f32.mrb[0].mxu0
  %v298 = vadd.f32 %v190, %v297
  %v299 = vpop.f32.mrb[0].mxu0
  %300 = vmatprep.mubr.f32.mxu0 0.0
  %301 = vmatmul.mubr.f32.gmra.mrb[0].mxu0 %v205
  %v302 = vpop.f32.mrb[0].mxu0
  %v303 = vadd.f32 %v190, %v302
  %v304 = vpop.f32.mrb[0].mxu0
  %305 = vmatprep.mubr.f32.mxu0 0.0
  %306 = vmatmul.mubr.f32.gmra.mrb[0].mxu0 %v208
  %v307 = vpop.f32.mrb[0].mxu0
  %v308 = vadd.f32 %v190, %v307
  %v309 = vpop.f32.mrb[0].mxu0
  %310 = vmatprep.mubr.f32.mxu0 0.0
  %311 = vmatmul.mubr.f32.gmra.mrb[0].mxu0 %v211
  %v312 = vpop.f32.mrb[0].mxu0
  %v313 = vadd.f32 %v190, %v312
  %v314 = vpop.f32.mrb[0].mxu0
  %315 = vmatprep.mubr.f32.mxu0 0.0
  %316 = vmatmul.mubr.f32.gmra.mrb[0].mxu0 %v214
  %v317 = vpop.f32.mrb[0].mxu0
  %v318 = vadd.f32 %v190, %v317
  %v319 = vpop.f32.mrb[0].mxu0
  %320 = vdwg.mxu0
  %vm321 = vcmask 785408
  %322 = vst.msk [vmem:[#allocation2] sm:$0xff] %vm321, %v283
  %323 = vst.msk [vmem:[#allocation2 + $0x8] sm:$0xff] %vm321, %v288
  %324 = vst.msk [vmem:[#allocation2 + $0x10] sm:$0xff] %vm321, %v293
  %325 = vst.msk [vmem:[#allocation2 + $0x18] sm:$0xff] %vm321, %v298
  %326 = vst.msk [vmem:[#allocation2 + $0x20] sm:$0xff] %vm321, %v303
  %327 = vst.msk [vmem:[#allocation2 + $0x28] sm:$0xff] %vm321, %v308
  %328 = vst.msk [vmem:[#allocation2 + $0x30] sm:$0xff] %vm321, %v313
  %329 = vst.msk [vmem:[#allocation2 + $0x38] sm:$0xff] %vm321, %v318
  %v330 = vld [vmem:[%s3] sm:$0xff]
  %v331 = vld [vmem:[%s3 + $0x8] sm:$0xff]
  %v332 = vld [vmem:[%s3 + $0x10] sm:$0xff]
  %v333 = vld [vmem:[%s3 + $0x18] sm:$0xff]
  %v334 = vld [vmem:[#allocation2] sm:$0xff]
  %v336 = vsel %vm191, 0.0, 0
  %338 = vmatprep.subr.mxu0 0.0
  %339 = vmatpush1.msra.mxu0 %v330
  %340 = vmatprep.subr.mxu0 0.0
  %341 = vmatpush1.msra.mxu0 %v331
  %342 = vmatprep.subr.mxu0 0.0
  %343 = vmatpush1.msra.mxu0 %v332
  %344 = vmatprep.subr.mxu0 0.0
  %345 = vmatpush1.msra.mxu0 %v333
  %346 = vmatprep.subr.mxu0 0.0
  %347 = vmatpush1.msra.mxu0 0.0
  %348 = vmatprep.subr.mxu0 0.0
  %349 = vmatpush1.msra.mxu0 0.0
  %350 = vmatprep.subr.mxu0 0.0
  %351 = vmatpush1.msra.mxu0 0.0
  %352 = vmatprep.subr.mxu0 0.0
  %353 = vmatpush1.msra.mxu0 0.0
  %354 = vmatprep.subr.mxu0 0.0
  %355 = vmatpush1.msra.mxu0 0.0
  %356 = vmatprep.subr.mxu0 0.0
  %357 = vmatpush1.msra.mxu0 0.0
  %358 = vmatprep.subr.mxu0 0.0
  %359 = vmatpush1.msra.mxu0 0.0
  %360 = vmatprep.subr.mxu0 0.0
  %361 = vmatpush1.msra.mxu0 0.0
  %362 = vmatprep.subr.mxu0 0.0
  %363 = vmatpush1.msra.mxu0 0.0
  %364 = vmatprep.subr.mxu0 0.0
  %365 = vmatpush1.msra.mxu0 0.0
  %366 = vmatprep.subr.mxu0 0.0
  %367 = vmatpush1.msra.mxu0 0.0
  %368 = vmatprep.subr.mxu0 0.0
  %369 = vmatpush1.msra.mxu0 0.0
  %370 = vmatprep.subr.mxu0 0.0
  %371 = vmatpush1.msra.mxu0 0.0
  %372 = vmatprep.subr.mxu0 0.0
  %373 = vmatpush1.msra.mxu0 0.0
  %374 = vmatprep.subr.mxu0 0.0
  %375 = vmatpush1.msra.mxu0 0.0
  %376 = vmatprep.subr.mxu0 0.0
  %377 = vmatpush1.msra.mxu0 0.0
  %378 = vmatprep.subr.mxu0 0.0
  %379 = vmatpush1.msra.mxu0 0.0
  %380 = vmatprep.subr.mxu0 0.0
  %381 = vmatpush1.msra.mxu0 0.0
  %382 = vmatprep.subr.mxu0 0.0
  %383 = vmatpush1.msra.mxu0 0.0
  %384 = vmatprep.subr.mxu0 0.0
  %385 = vmatpush1.msra.mxu0 0.0
  %386 = vmatprep.subr.mxu0 0.0
  %387 = vmatpush1.msra.mxu0 0.0
  %388 = vmatprep.subr.mxu0 0.0
  %389 = vmatpush1.msra.mxu0 0.0
  %390 = vmatprep.subr.mxu0 0.0
  %391 = vmatpush1.msra.mxu0 0.0
  %392 = vmatprep.subr.mxu0 0.0
  %393 = vmatpush1.msra.mxu0 0.0
  %394 = vmatprep.subr.mxu0 0.0
  %395 = vmatpush1.msra.mxu0 0.0
  %396 = vmatprep.subr.mxu0 0.0
  %397 = vmatpush1.msra.mxu0 0.0
  %398 = vmatprep.subr.mxu0 0.0
  %399 = vmatpush1.msra.mxu0 0.0
  %400 = vmatprep.subr.mxu0 0.0
  %401 = vmatpush1.msra.mxu0 0.0
  %402 = vmatprep.mubr.f32.mxu0 0.0
  %403 = vmatmul.mubr.f32.gmra.mrb[0].mxu0 %v336
  %v404 = vpop.f32.mrb[0].mxu0
  %v405 = vadd.f32 %v29, %v404
  %v406 = vpop.f32.mrb[0].mxu0
  %407 = vdwg.mxu0
  %v408 = vadd.f32 %v334, %v405
  %v409 = vmul.f32 %v408, 0.5
  %v410 = vtanh.pop %v409
  %v411 = vmul.f32 %v410, 0.5
  %v412 = vadd.f32 %v411, 0.5
  %414 = vrot.lane.b32.xlu0 %v405, 64
  %v415 = vpop.permute.xlu0 %414
  %v417 = vmul.f32 %v412, %v415
  %419 = vrot.lane.b32.xlu0 %v417, 64
  %v420 = vpop.permute.xlu0 %419
  %v422 = vadd.f32 %v334, %v420
  %v423 = vtanh.pop %v422
  %v424 = vsub.f32 1.0, %v412
  %426 = vrot.lane.b32.xlu0 %v423, 96
  %v427 = vpop.permute.xlu0 %426
  %v429 = vmul.f32 %v424, %v427
  %v430 = vmul.f32 %v412, 0.0
  %v431 = vadd.f32 %v429, %v430
  %433 = vrot.lane.b32.xlu0 %v431, 96
  %v434 = vpop.permute.xlu0 %433
  %436 = vst.msk [vmem:[#allocation3] sm:$0xff] %vm191, %v434
  %s437 = scalar_lea.vmem [#allocation2], 8
  %v438 = vld [vmem:[%s437] sm:$0xff]
  %v439 = vsel %vm191, %v434, 0
  %441 = vmatprep.subr.mxu0 0.0
  %442 = vmatpush1.msra.mxu0 %v330
  %443 = vmatprep.subr.mxu0 0.0
  %444 = vmatpush1.msra.mxu0 %v331
  %445 = vmatprep.subr.mxu0 0.0
  %446 = vmatpush1.msra.mxu0 %v332
  %447 = vmatprep.subr.mxu0 0.0
  %448 = vmatpush1.msra.mxu0 %v333
  %449 = vmatprep.subr.mxu0 0.0
  %450 = vmatpush1.msra.mxu0 0.0
  %451 = vmatprep.subr.mxu0 0.0
  %452 = vmatpush1.msra.mxu0 0.0
  %453 = vmatprep.subr.mxu0 0.0
  %454 = vmatpush1.msra.mxu0 0.0
  %455 = vmatprep.subr.mxu0 0.0
  %456 = vmatpush1.msra.mxu0 0.0
  %457 = vmatprep.subr.mxu0 0.0
  %458 = vmatpush1.msra.mxu0 0.0
  %459 = vmatprep.subr.mxu0 0.0
  %460 = vmatpush1.msra.mxu0 0.0
  %461 = vmatprep.subr.mxu0 0.0
  %462 = vmatpush1.msra.mxu0 0.0
  %463 = vmatprep.subr.mxu0 0.0
  %464 = vmatpush1.msra.mxu0 0.0
  %465 = vmatprep.subr.mxu0 0.0
  %466 = vmatpush1.msra.mxu0 0.0
  %467 = vmatprep.subr.mxu0 0.0
  %468 = vmatpush1.msra.mxu0 0.0
  %469 = vmatprep.subr.mxu0 0.0
  %470 = vmatpush1.msra.mxu0 0.0
  %471 = vmatprep.subr.mxu0 0.0
  %472 = vmatpush1.msra.mxu0 0.0
  %473 = vmatprep.subr.mxu0 0.0
  %474 = vmatpush1.msra.mxu0 0.0
  %475 = vmatprep.subr.mxu0 0.0
  %476 = vmatpush1.msra.mxu0 0.0
  %477 = vmatprep.subr.mxu0 0.0
  %478 = vmatpush1.msra.mxu0 0.0
  %479 = vmatprep.subr.mxu0 0.0
  %480 = vmatpush1.msra.mxu0 0.0
  %481 = vmatprep.subr.mxu0 0.0
  %482 = vmatpush1.msra.mxu0 0.0
  %483 = vmatprep.subr.mxu0 0.0
  %484 = vmatpush1.msra.mxu0 0.0
  %485 = vmatprep.subr.mxu0 0.0
  %486 = vmatpush1.msra.mxu0 0.0
  %487 = vmatprep.subr.mxu0 0.0
  %488 = vmatpush1.msra.mxu0 0.0
  %489 = vmatprep.subr.mxu0 0.0
  %490 = vmatpush1.msra.mxu0 0.0
  %491 = vmatprep.subr.mxu0 0.0
  %492 = vmatpush1.msra.mxu0 0.0
  %493 = vmatprep.subr.mxu0 0.0
  %494 = vmatpush1.msra.mxu0 0.0
  %495 = vmatprep.subr.mxu0 0.0
  %496 = vmatpush1.msra.mxu0 0.0
  %497 = vmatprep.subr.mxu0 0.0
  %498 = vmatpush1.msra.mxu0 0.0
  %499 = vmatprep.subr.mxu0 0.0
  %500 = vmatpush1.msra.mxu0 0.0
  %501 = vmatprep.subr.mxu0 0.0
  %502 = vmatpush1.msra.mxu0 0.0
  %503 = vmatprep.subr.mxu0 0.0
  %504 = vmatpush1.msra.mxu0 0.0
  %505 = vmatprep.mubr.f32.mxu0 0.0
  %506 = vmatmul.mubr.f32.gmra.mrb[0].mxu0 %v439
  %v507 = vpop.f32.mrb[0].mxu0
  %v508 = vadd.f32 %v29, %v507
  %v509 = vpop.f32.mrb[0].mxu0
  %510 = vdwg.mxu0
  %v511 = vadd.f32 %v438, %v508
  %v512 = vmul.f32 %v511, 0.5
  %v513 = vtanh.pop %v512
  %v514 = vmul.f32 %v513, 0.5
  %v515 = vadd.f32 %v514, 0.5
  %517 = vrot.lane.b32.xlu0 %v508, 64
  %v518 = vpop.permute.xlu0 %517
  %v520 = vmul.f32 %v515, %v518
  %522 = vrot.lane.b32.xlu0 %v520, 64
  %v523 = vpop.permute.xlu0 %522
  %v525 = vadd.f32 %v438, %v523
  %v526 = vtanh.pop %v525
  %v527 = vsub.f32 1.0, %v515
  %529 = vrot.lane.b32.xlu0 %v526, 96
  %v530 = vpop.permute.xlu0 %529
  %v532 = vmul.f32 %v527, %v530
  %v533 = vmul.f32 %v515, %v431
  %v534 = vadd.f32 %v532, %v533
  %536 = vrot.lane.b32.xlu0 %v534, 96
  %v537 = vpop.permute.xlu0 %536
  %s539 = scalar_lea.vmem [#allocation3], 8
  %540 = vst.msk [vmem:[%s539] sm:$0xff] %vm191, %v537
  %s541 = scalar_lea.vmem [#allocation2], 16
  %v542 = vld [vmem:[%s541] sm:$0xff]
  %v543 = vsel %vm191, %v537, 0
  %545 = vmatprep.subr.mxu0 0.0
  %546 = vmatpush1.msra.mxu0 %v330
  %547 = vmatprep.subr.mxu0 0.0
  %548 = vmatpush1.msra.mxu0 %v331
  %549 = vmatprep.subr.mxu0 0.0
  %550 = vmatpush1.msra.mxu0 %v332
  %551 = vmatprep.subr.mxu0 0.0
  %552 = vmatpush1.msra.mxu0 %v333
  %553 = vmatprep.subr.mxu0 0.0
  %554 = vmatpush1.msra.mxu0 0.0
  %555 = vmatprep.subr.mxu0 0.0
  %556 = vmatpush1.msra.mxu0 0.0
  %557 = vmatprep.subr.mxu0 0.0
  %558 = vmatpush1.msra.mxu0 0.0
  %559 = vmatprep.subr.mxu0 0.0
  %560 = vmatpush1.msra.mxu0 0.0
  %561 = vmatprep.subr.mxu0 0.0
  %562 = vmatpush1.msra.mxu0 0.0
  %563 = vmatprep.subr.mxu0 0.0
  %564 = vmatpush1.msra.mxu0 0.0
  %565 = vmatprep.subr.mxu0 0.0
  %566 = vmatpush1.msra.mxu0 0.0
  %567 = vmatprep.subr.mxu0 0.0
  %568 = vmatpush1.msra.mxu0 0.0
  %569 = vmatprep.subr.mxu0 0.0
  %570 = vmatpush1.msra.mxu0 0.0
  %571 = vmatprep.subr.mxu0 0.0
  %572 = vmatpush1.msra.mxu0 0.0
  %573 = vmatprep.subr.mxu0 0.0
  %574 = vmatpush1.msra.mxu0 0.0
  %575 = vmatprep.subr.mxu0 0.0
  %576 = vmatpush1.msra.mxu0 0.0
  %577 = vmatprep.subr.mxu0 0.0
  %578 = vmatpush1.msra.mxu0 0.0
  %579 = vmatprep.subr.mxu0 0.0
  %580 = vmatpush1.msra.mxu0 0.0
  %581 = vmatprep.subr.mxu0 0.0
  %582 = vmatpush1.msra.mxu0 0.0
  %583 = vmatprep.subr.mxu0 0.0
  %584 = vmatpush1.msra.mxu0 0.0
  %585 = vmatprep.subr.mxu0 0.0
  %586 = vmatpush1.msra.mxu0 0.0
  %587 = vmatprep.subr.mxu0 0.0
  %588 = vmatpush1.msra.mxu0 0.0
  %589 = vmatprep.subr.mxu0 0.0
  %590 = vmatpush1.msra.mxu0 0.0
  %591 = vmatprep.subr.mxu0 0.0
  %592 = vmatpush1.msra.mxu0 0.0
  %593 = vmatprep.subr.mxu0 0.0
  %594 = vmatpush1.msra.mxu0 0.0
  %595 = vmatprep.subr.mxu0 0.0
  %596 = vmatpush1.msra.mxu0 0.0
  %597 = vmatprep.subr.mxu0 0.0
  %598 = vmatpush1.msra.mxu0 0.0
  %599 = vmatprep.subr.mxu0 0.0
  %600 = vmatpush1.msra.mxu0 0.0
  %601 = vmatprep.subr.mxu0 0.0
  %602 = vmatpush1.msra.mxu0 0.0
  %603 = vmatprep.subr.mxu0 0.0
  %604 = vmatpush1.msra.mxu0 0.0
  %605 = vmatprep.subr.mxu0 0.0
  %606 = vmatpush1.msra.mxu0 0.0
  %607 = vmatprep.subr.mxu0 0.0
  %608 = vmatpush1.msra.mxu0 0.0
  %609 = vmatprep.mubr.f32.mxu0 0.0
  %610 = vmatmul.mubr.f32.gmra.mrb[0].mxu0 %v543
  %v611 = vpop.f32.mrb[0].mxu0
  %v612 = vadd.f32 %v29, %v611
  %v613 = vpop.f32.mrb[0].mxu0
  %614 = vdwg.mxu0
  %v615 = vadd.f32 %v542, %v612
  %v616 = vmul.f32 %v615, 0.5
  %v617 = vtanh.pop %v616
  %v618 = vmul.f32 %v617, 0.5
  %v619 = vadd.f32 %v618, 0.5
  %621 = vrot.lane.b32.xlu0 %v612, 64
  %v622 = vpop.permute.xlu0 %621
  %v624 = vmul.f32 %v619, %v622
  %626 = vrot.lane.b32.xlu0 %v624, 64
  %v627 = vpop.permute.xlu0 %626
  %v629 = vadd.f32 %v542, %v627
  %v630 = vtanh.pop %v629
  %v631 = vsub.f32 1.0, %v619
  %633 = vrot.lane.b32.xlu0 %v630, 96
  %v634 = vpop.permute.xlu0 %633
  %v636 = vmul.f32 %v631, %v634
  %v637 = vmul.f32 %v619, %v534
  %v638 = vadd.f32 %v636, %v637
  %640 = vrot.lane.b32.xlu0 %v638, 96
  %v641 = vpop.permute.xlu0 %640
  %s643 = scalar_lea.vmem [#allocation3], 16
  %644 = vst.msk [vmem:[%s643] sm:$0xff] %vm191, %v641
  %s645 = scalar_lea.vmem [#allocation2], 24
  %v646 = vld [vmem:[%s645] sm:$0xff]
  %v647 = vsel %vm191, %v641, 0
  %649 = vmatprep.subr.mxu0 0.0
  %650 = vmatpush1.msra.mxu0 %v330
  %651 = vmatprep.subr.mxu0 0.0
  %652 = vmatpush1.msra.mxu0 %v331
  %653 = vmatprep.subr.mxu0 0.0
  %654 = vmatpush1.msra.mxu0 %v332
  %655 = vmatprep.subr.mxu0 0.0
  %656 = vmatpush1.msra.mxu0 %v333
  %657 = vmatprep.subr.mxu0 0.0
  %658 = vmatpush1.msra.mxu0 0.0
  %659 = vmatprep.subr.mxu0 0.0
  %660 = vmatpush1.msra.mxu0 0.0
  %661 = vmatprep.subr.mxu0 0.0
  %662 = vmatpush1.msra.mxu0 0.0
  %663 = vmatprep.subr.mxu0 0.0
  %664 = vmatpush1.msra.mxu0 0.0
  %665 = vmatprep.subr.mxu0 0.0
  %666 = vmatpush1.msra.mxu0 0.0
  %667 = vmatprep.subr.mxu0 0.0
  %668 = vmatpush1.msra.mxu0 0.0
  %669 = vmatprep.subr.mxu0 0.0
  %670 = vmatpush1.msra.mxu0 0.0
  %671 = vmatprep.subr.mxu0 0.0
  %672 = vmatpush1.msra.mxu0 0.0
  %673 = vmatprep.subr.mxu0 0.0
  %674 = vmatpush1.msra.mxu0 0.0
  %675 = vmatprep.subr.mxu0 0.0
  %676 = vmatpush1.msra.mxu0 0.0
  %677 = vmatprep.subr.mxu0 0.0
  %678 = vmatpush1.msra.mxu0 0.0
  %679 = vmatprep.subr.mxu0 0.0
  %680 = vmatpush1.msra.mxu0 0.0
  %681 = vmatprep.subr.mxu0 0.0
  %682 = vmatpush1.msra.mxu0 0.0
  %683 = vmatprep.subr.mxu0 0.0
  %684 = vmatpush1.msra.mxu0 0.0
  %685 = vmatprep.subr.mxu0 0.0
  %686 = vmatpush1.msra.mxu0 0.0
  %687 = vmatprep.subr.mxu0 0.0
  %688 = vmatpush1.msra.mxu0 0.0
  %689 = vmatprep.subr.mxu0 0.0
  %690 = vmatpush1.msra.mxu0 0.0
  %691 = vmatprep.subr.mxu0 0.0
  %692 = vmatpush1.msra.mxu0 0.0
  %693 = vmatprep.subr.mxu0 0.0
  %694 = vmatpush1.msra.mxu0 0.0
  %695 = vmatprep.subr.mxu0 0.0
  %696 = vmatpush1.msra.mxu0 0.0
  %697 = vmatprep.subr.mxu0 0.0
  %698 = vmatpush1.msra.mxu0 0.0
  %699 = vmatprep.subr.mxu0 0.0
  %700 = vmatpush1.msra.mxu0 0.0
  %701 = vmatprep.subr.mxu0 0.0
  %702 = vmatpush1.msra.mxu0 0.0
  %703 = vmatprep.subr.mxu0 0.0
  %704 = vmatpush1.msra.mxu0 0.0
  %705 = vmatprep.subr.mxu0 0.0
  %706 = vmatpush1.msra.mxu0 0.0
  %707 = vmatprep.subr.mxu0 0.0
  %708 = vmatpush1.msra.mxu0 0.0
  %709 = vmatprep.subr.mxu0 0.0
  %710 = vmatpush1.msra.mxu0 0.0
  %711 = vmatprep.subr.mxu0 0.0
  %712 = vmatpush1.msra.mxu0 0.0
  %713 = vmatprep.mubr.f32.mxu0 0.0
  %714 = vmatmul.mubr.f32.gmra.mrb[0].mxu0 %v647
  %v715 = vpop.f32.mrb[0].mxu0
  %v716 = vadd.f32 %v29, %v715
  %v717 = vpop.f32.mrb[0].mxu0
  %718 = vdwg.mxu0
  %v719 = vadd.f32 %v646, %v716
  %v720 = vmul.f32 %v719, 0.5
  %v721 = vtanh.pop %v720
  %v722 = vmul.f32 %v721, 0.5
  %v723 = vadd.f32 %v722, 0.5
  %725 = vrot.lane.b32.xlu0 %v716, 64
  %v726 = vpop.permute.xlu0 %725
  %v728 = vmul.f32 %v723, %v726
  %730 = vrot.lane.b32.xlu0 %v728, 64
  %v731 = vpop.permute.xlu0 %730
  %v733 = vadd.f32 %v646, %v731
  %v734 = vtanh.pop %v733
  %v735 = vsub.f32 1.0, %v723
  %737 = vrot.lane.b32.xlu0 %v734, 96
  %v738 = vpop.permute.xlu0 %737
  %v740 = vmul.f32 %v735, %v738
  %v741 = vmul.f32 %v723, %v638
  %v742 = vadd.f32 %v740, %v741
  %744 = vrot.lane.b32.xlu0 %v742, 96
  %v745 = vpop.permute.xlu0 %744
  %s747 = scalar_lea.vmem [#allocation3], 24
  %748 = vst.msk [vmem:[%s747] sm:$0xff] %vm191, %v745
  %s749 = scalar_lea.vmem [#allocation2], 32
  %v750 = vld [vmem:[%s749] sm:$0xff]
  %v751 = vsel %vm191, %v745, 0
  %753 = vmatprep.subr.mxu0 0.0
  %754 = vmatpush1.msra.mxu0 %v330
  %755 = vmatprep.subr.mxu0 0.0
  %756 = vmatpush1.msra.mxu0 %v331
  %757 = vmatprep.subr.mxu0 0.0
  %758 = vmatpush1.msra.mxu0 %v332
  %759 = vmatprep.subr.mxu0 0.0
  %760 = vmatpush1.msra.mxu0 %v333
  %761 = vmatprep.subr.mxu0 0.0
  %762 = vmatpush1.msra.mxu0 0.0
  %763 = vmatprep.subr.mxu0 0.0
  %764 = vmatpush1.msra.mxu0 0.0
  %765 = vmatprep.subr.mxu0 0.0
  %766 = vmatpush1.msra.mxu0 0.0
  %767 = vmatprep.subr.mxu0 0.0
  %768 = vmatpush1.msra.mxu0 0.0
  %769 = vmatprep.subr.mxu0 0.0
  %770 = vmatpush1.msra.mxu0 0.0
  %771 = vmatprep.subr.mxu0 0.0
  %772 = vmatpush1.msra.mxu0 0.0
  %773 = vmatprep.subr.mxu0 0.0
  %774 = vmatpush1.msra.mxu0 0.0
  %775 = vmatprep.subr.mxu0 0.0
  %776 = vmatpush1.msra.mxu0 0.0
  %777 = vmatprep.subr.mxu0 0.0
  %778 = vmatpush1.msra.mxu0 0.0
  %779 = vmatprep.subr.mxu0 0.0
  %780 = vmatpush1.msra.mxu0 0.0
  %781 = vmatprep.subr.mxu0 0.0
  %782 = vmatpush1.msra.mxu0 0.0
  %783 = vmatprep.subr.mxu0 0.0
  %784 = vmatpush1.msra.mxu0 0.0
  %785 = vmatprep.subr.mxu0 0.0
  %786 = vmatpush1.msra.mxu0 0.0
  %787 = vmatprep.subr.mxu0 0.0
  %788 = vmatpush1.msra.mxu0 0.0
  %789 = vmatprep.subr.mxu0 0.0
  %790 = vmatpush1.msra.mxu0 0.0
  %791 = vmatprep.subr.mxu0 0.0
  %792 = vmatpush1.msra.mxu0 0.0
  %793 = vmatprep.subr.mxu0 0.0
  %794 = vmatpush1.msra.mxu0 0.0
  %795 = vmatprep.subr.mxu0 0.0
  %796 = vmatpush1.msra.mxu0 0.0
  %797 = vmatprep.subr.mxu0 0.0
  %798 = vmatpush1.msra.mxu0 0.0
  %799 = vmatprep.subr.mxu0 0.0
  %800 = vmatpush1.msra.mxu0 0.0
  %801 = vmatprep.subr.mxu0 0.0
  %802 = vmatpush1.msra.mxu0 0.0
  %803 = vmatprep.subr.mxu0 0.0
  %804 = vmatpush1.msra.mxu0 0.0
  %805 = vmatprep.subr.mxu0 0.0
  %806 = vmatpush1.msra.mxu0 0.0
  %807 = vmatprep.subr.mxu0 0.0
  %808 = vmatpush1.msra.mxu0 0.0
  %809 = vmatprep.subr.mxu0 0.0
  %810 = vmatpush1.msra.mxu0 0.0
  %811 = vmatprep.subr.mxu0 0.0
  %812 = vmatpush1.msra.mxu0 0.0
  %813 = vmatprep.subr.mxu0 0.0
  %814 = vmatpush1.msra.mxu0 0.0
  %815 = vmatprep.subr.mxu0 0.0
  %816 = vmatpush1.msra.mxu0 0.0
  %817 = vmatprep.mubr.f32.mxu0 0.0
  %818 = vmatmul.mubr.f32.gmra.mrb[0].mxu0 %v751
  %v819 = vpop.f32.mrb[0].mxu0
  %v820 = vadd.f32 %v29, %v819
  %v821 = vpop.f32.mrb[0].mxu0
  %822 = vdwg.mxu0
  %v823 = vadd.f32 %v750, %v820
  %v824 = vmul.f32 %v823, 0.5
  %v825 = vtanh.pop %v824
  %v826 = vmul.f32 %v825, 0.5
  %v827 = vadd.f32 %v826, 0.5
  %829 = vrot.lane.b32.xlu0 %v820, 64
  %v830 = vpop.permute.xlu0 %829
  %v832 = vmul.f32 %v827, %v830
  %834 = vrot.lane.b32.xlu0 %v832, 64
  %v835 = vpop.permute.xlu0 %834
  %v837 = vadd.f32 %v750, %v835
  %v838 = vtanh.pop %v837
  %v839 = vsub.f32 1.0, %v827
  %841 = vrot.lane.b32.xlu0 %v838, 96
  %v842 = vpop.permute.xlu0 %841
  %v844 = vmul.f32 %v839, %v842
  %v845 = vmul.f32 %v827, %v742
  %v846 = vadd.f32 %v844, %v845
  %848 = vrot.lane.b32.xlu0 %v846, 96
  %v849 = vpop.permute.xlu0 %848
  %s851 = scalar_lea.vmem [#allocation3], 32
  %852 = vst.msk [vmem:[%s851] sm:$0xff] %vm191, %v849
  %s853 = scalar_lea.vmem [#allocation2], 40
  %v854 = vld [vmem:[%s853] sm:$0xff]
  %v855 = vsel %vm191, %v849, 0
  %857 = vmatprep.subr.mxu0 0.0
  %858 = vmatpush1.msra.mxu0 %v330
  %859 = vmatprep.subr.mxu0 0.0
  %860 = vmatpush1.msra.mxu0 %v331
  %861 = vmatprep.subr.mxu0 0.0
  %862 = vmatpush1.msra.mxu0 %v332
  %863 = vmatprep.subr.mxu0 0.0
  %864 = vmatpush1.msra.mxu0 %v333
  %865 = vmatprep.subr.mxu0 0.0
  %866 = vmatpush1.msra.mxu0 0.0
  %867 = vmatprep.subr.mxu0 0.0
  %868 = vmatpush1.msra.mxu0 0.0
  %869 = vmatprep.subr.mxu0 0.0
  %870 = vmatpush1.msra.mxu0 0.0
  %871 = vmatprep.subr.mxu0 0.0
  %872 = vmatpush1.msra.mxu0 0.0
  %873 = vmatprep.subr.mxu0 0.0
  %874 = vmatpush1.msra.mxu0 0.0
  %875 = vmatprep.subr.mxu0 0.0
  %876 = vmatpush1.msra.mxu0 0.0
  %877 = vmatprep.subr.mxu0 0.0
  %878 = vmatpush1.msra.mxu0 0.0
  %879 = vmatprep.subr.mxu0 0.0
  %880 = vmatpush1.msra.mxu0 0.0
  %881 = vmatprep.subr.mxu0 0.0
  %882 = vmatpush1.msra.mxu0 0.0
  %883 = vmatprep.subr.mxu0 0.0
  %884 = vmatpush1.msra.mxu0 0.0
  %885 = vmatprep.subr.mxu0 0.0
  %886 = vmatpush1.msra.mxu0 0.0
  %887 = vmatprep.subr.mxu0 0.0
  %888 = vmatpush1.msra.mxu0 0.0
  %889 = vmatprep.subr.mxu0 0.0
  %890 = vmatpush1.msra.mxu0 0.0
  %891 = vmatprep.subr.mxu0 0.0
  %892 = vmatpush1.msra.mxu0 0.0
  %893 = vmatprep.subr.mxu0 0.0
  %894 = vmatpush1.msra.mxu0 0.0
  %895 = vmatprep.subr.mxu0 0.0
  %896 = vmatpush1.msra.mxu0 0.0
  %897 = vmatprep.subr.mxu0 0.0
  %898 = vmatpush1.msra.mxu0 0.0
  %899 = vmatprep.subr.mxu0 0.0
  %900 = vmatpush1.msra.mxu0 0.0
  %901 = vmatprep.subr.mxu0 0.0
  %902 = vmatpush1.msra.mxu0 0.0
  %903 = vmatprep.subr.mxu0 0.0
  %904 = vmatpush1.msra.mxu0 0.0
  %905 = vmatprep.subr.mxu0 0.0
  %906 = vmatpush1.msra.mxu0 0.0
  %907 = vmatprep.subr.mxu0 0.0
  %908 = vmatpush1.msra.mxu0 0.0
  %909 = vmatprep.subr.mxu0 0.0
  %910 = vmatpush1.msra.mxu0 0.0
  %911 = vmatprep.subr.mxu0 0.0
  %912 = vmatpush1.msra.mxu0 0.0
  %913 = vmatprep.subr.mxu0 0.0
  %914 = vmatpush1.msra.mxu0 0.0
  %915 = vmatprep.subr.mxu0 0.0
  %916 = vmatpush1.msra.mxu0 0.0
  %917 = vmatprep.subr.mxu0 0.0
  %918 = vmatpush1.msra.mxu0 0.0
  %919 = vmatprep.subr.mxu0 0.0
  %920 = vmatpush1.msra.mxu0 0.0
  %921 = vmatprep.mubr.f32.mxu0 0.0
  %922 = vmatmul.mubr.f32.gmra.mrb[0].mxu0 %v855
  %v923 = vpop.f32.mrb[0].mxu0
  %v924 = vadd.f32 %v29, %v923
  %v925 = vpop.f32.mrb[0].mxu0
  %926 = vdwg.mxu0
  %v927 = vadd.f32 %v854, %v924
  %v928 = vmul.f32 %v927, 0.5
  %v929 = vtanh.pop %v928
  %v930 = vmul.f32 %v929, 0.5
  %v931 = vadd.f32 %v930, 0.5
  %933 = vrot.lane.b32.xlu0 %v924, 64
  %v934 = vpop.permute.xlu0 %933
  %v936 = vmul.f32 %v931, %v934
  %938 = vrot.lane.b32.xlu0 %v936, 64
  %v939 = vpop.permute.xlu0 %938
  %v941 = vadd.f32 %v854, %v939
  %v942 = vtanh.pop %v941
  %v943 = vsub.f32 1.0, %v931
  %945 = vrot.lane.b32.xlu0 %v942, 96
  %v946 = vpop.permute.xlu0 %945
  %v948 = vmul.f32 %v943, %v946
  %v949 = vmul.f32 %v931, %v846
  %v950 = vadd.f32 %v948, %v949
  %952 = vrot.lane.b32.xlu0 %v950, 96
  %v953 = vpop.permute.xlu0 %952
  %s955 = scalar_lea.vmem [#allocation3], 40
  %956 = vst.msk [vmem:[%s955] sm:$0xff] %vm191, %v953
  %s957 = scalar_lea.vmem [#allocation2], 48
  %v958 = vld [vmem:[%s957] sm:$0xff]
  %v959 = vsel %vm191, %v953, 0
  %961 = vmatprep.subr.mxu0 0.0
  %962 = vmatpush1.msra.mxu0 %v330
  %963 = vmatprep.subr.mxu0 0.0
  %964 = vmatpush1.msra.mxu0 %v331
  %965 = vmatprep.subr.mxu0 0.0
  %966 = vmatpush1.msra.mxu0 %v332
  %967 = vmatprep.subr.mxu0 0.0
  %968 = vmatpush1.msra.mxu0 %v333
  %969 = vmatprep.subr.mxu0 0.0
  %970 = vmatpush1.msra.mxu0 0.0
  %971 = vmatprep.subr.mxu0 0.0
  %972 = vmatpush1.msra.mxu0 0.0
  %973 = vmatprep.subr.mxu0 0.0
  %974 = vmatpush1.msra.mxu0 0.0
  %975 = vmatprep.subr.mxu0 0.0
  %976 = vmatpush1.msra.mxu0 0.0
  %977 = vmatprep.subr.mxu0 0.0
  %978 = vmatpush1.msra.mxu0 0.0
  %979 = vmatprep.subr.mxu0 0.0
  %980 = vmatpush1.msra.mxu0 0.0
  %981 = vmatprep.subr.mxu0 0.0
  %982 = vmatpush1.msra.mxu0 0.0
  %983 = vmatprep.subr.mxu0 0.0
  %984 = vmatpush1.msra.mxu0 0.0
  %985 = vmatprep.subr.mxu0 0.0
  %986 = vmatpush1.msra.mxu0 0.0
  %987 = vmatprep.subr.mxu0 0.0
  %988 = vmatpush1.msra.mxu0 0.0
  %989 = vmatprep.subr.mxu0 0.0
  %990 = vmatpush1.msra.mxu0 0.0
  %991 = vmatprep.subr.mxu0 0.0
  %992 = vmatpush1.msra.mxu0 0.0
  %993 = vmatprep.subr.mxu0 0.0
  %994 = vmatpush1.msra.mxu0 0.0
  %995 = vmatprep.subr.mxu0 0.0
  %996 = vmatpush1.msra.mxu0 0.0
  %997 = vmatprep.subr.mxu0 0.0
  %998 = vmatpush1.msra.mxu0 0.0
  %999 = vmatprep.subr.mxu0 0.0
  %1000 = vmatpush1.msra.mxu0 0.0
  %1001 = vmatprep.subr.mxu0 0.0
  %1002 = vmatpush1.msra.mxu0 0.0
  %1003 = vmatprep.subr.mxu0 0.0
  %1004 = vmatpush1.msra.mxu0 0.0
  %1005 = vmatprep.subr.mxu0 0.0
  %1006 = vmatpush1.msra.mxu0 0.0
  %1007 = vmatprep.subr.mxu0 0.0
  %1008 = vmatpush1.msra.mxu0 0.0
  %1009 = vmatprep.subr.mxu0 0.0
  %1010 = vmatpush1.msra.mxu0 0.0
  %1011 = vmatprep.subr.mxu0 0.0
  %1012 = vmatpush1.msra.mxu0 0.0
  %1013 = vmatprep.subr.mxu0 0.0
  %1014 = vmatpush1.msra.mxu0 0.0
  %1015 = vmatprep.subr.mxu0 0.0
  %1016 = vmatpush1.msra.mxu0 0.0
  %1017 = vmatprep.subr.mxu0 0.0
  %1018 = vmatpush1.msra.mxu0 0.0
  %1019 = vmatprep.subr.mxu0 0.0
  %1020 = vmatpush1.msra.mxu0 0.0
  %1021 = vmatprep.subr.mxu0 0.0
  %1022 = vmatpush1.msra.mxu0 0.0
  %1023 = vmatprep.subr.mxu0 0.0
  %1024 = vmatpush1.msra.mxu0 0.0
  %1025 = vmatprep.mubr.f32.mxu0 0.0
  %1026 = vmatmul.mubr.f32.gmra.mrb[0].mxu0 %v959
  %v1027 = vpop.f32.mrb[0].mxu0
  %v1028 = vadd.f32 %v29, %v1027
  %v1029 = vpop.f32.mrb[0].mxu0
  %1030 = vdwg.mxu0
  %v1031 = vadd.f32 %v958, %v1028
  %v1032 = vmul.f32 %v1031, 0.5
  %v1033 = vtanh.pop %v1032
  %v1034 = vmul.f32 %v1033, 0.5
  %v1035 = vadd.f32 %v1034, 0.5
  %1037 = vrot.lane.b32.xlu0 %v1028, 64
  %v1038 = vpop.permute.xlu0 %1037
  %v1040 = vmul.f32 %v1035, %v1038
  %1042 = vrot.lane.b32.xlu0 %v1040, 64
  %v1043 = vpop.permute.xlu0 %1042
  %v1045 = vadd.f32 %v958, %v1043
  %v1046 = vtanh.pop %v1045
  %v1047 = vsub.f32 1.0, %v1035
  %1049 = vrot.lane.b32.xlu0 %v1046, 96
  %v1050 = vpop.permute.xlu0 %1049
  %v1052 = vmul.f32 %v1047, %v1050
  %v1053 = vmul.f32 %v1035, %v950
  %v1054 = vadd.f32 %v1052, %v1053
  %1056 = vrot.lane.b32.xlu0 %v1054, 96
  %v1057 = vpop.permute.xlu0 %1056
  %s1059 = scalar_lea.vmem [#allocation3], 48
  %1060 = vst.msk [vmem:[%s1059] sm:$0xff] %vm191, %v1057
  %s1061 = scalar_lea.vmem [#allocation2], 56
  %v1062 = vld [vmem:[%s1061] sm:$0xff]
  %v1063 = vsel %vm191, %v1057, 0
  %1065 = vmatprep.subr.mxu0 0.0
  %1066 = vmatpush1.msra.mxu0 %v330
  %1067 = vmatprep.subr.mxu0 0.0
  %1068 = vmatpush1.msra.mxu0 %v331
  %1069 = vmatprep.subr.mxu0 0.0
  %1070 = vmatpush1.msra.mxu0 %v332
  %1071 = vmatprep.subr.mxu0 0.0
  %1072 = vmatpush1.msra.mxu0 %v333
  %1073 = vmatprep.subr.mxu0 0.0
  %1074 = vmatpush1.msra.mxu0 0.0
  %1075 = vmatprep.subr.mxu0 0.0
  %1076 = vmatpush1.msra.mxu0 0.0
  %1077 = vmatprep.subr.mxu0 0.0
  %1078 = vmatpush1.msra.mxu0 0.0
  %1079 = vmatprep.subr.mxu0 0.0
  %1080 = vmatpush1.msra.mxu0 0.0
  %1081 = vmatprep.subr.mxu0 0.0
  %1082 = vmatpush1.msra.mxu0 0.0
  %1083 = vmatprep.subr.mxu0 0.0
  %1084 = vmatpush1.msra.mxu0 0.0
  %1085 = vmatprep.subr.mxu0 0.0
  %1086 = vmatpush1.msra.mxu0 0.0
  %1087 = vmatprep.subr.mxu0 0.0
  %1088 = vmatpush1.msra.mxu0 0.0
  %1089 = vmatprep.subr.mxu0 0.0
  %1090 = vmatpush1.msra.mxu0 0.0
  %1091 = vmatprep.subr.mxu0 0.0
  %1092 = vmatpush1.msra.mxu0 0.0
  %1093 = vmatprep.subr.mxu0 0.0
  %1094 = vmatpush1.msra.mxu0 0.0
  %1095 = vmatprep.subr.mxu0 0.0
  %1096 = vmatpush1.msra.mxu0 0.0
  %1097 = vmatprep.subr.mxu0 0.0
  %1098 = vmatpush1.msra.mxu0 0.0
  %1099 = vmatprep.subr.mxu0 0.0
  %1100 = vmatpush1.msra.mxu0 0.0
  %1101 = vmatprep.subr.mxu0 0.0
  %1102 = vmatpush1.msra.mxu0 0.0
  %1103 = vmatprep.subr.mxu0 0.0
  %1104 = vmatpush1.msra.mxu0 0.0
  %1105 = vmatprep.subr.mxu0 0.0
  %1106 = vmatpush1.msra.mxu0 0.0
  %1107 = vmatprep.subr.mxu0 0.0
  %1108 = vmatpush1.msra.mxu0 0.0
  %1109 = vmatprep.subr.mxu0 0.0
  %1110 = vmatpush1.msra.mxu0 0.0
  %1111 = vmatprep.subr.mxu0 0.0
  %1112 = vmatpush1.msra.mxu0 0.0
  %1113 = vmatprep.subr.mxu0 0.0
  %1114 = vmatpush1.msra.mxu0 0.0
  %1115 = vmatprep.subr.mxu0 0.0
  %1116 = vmatpush1.msra.mxu0 0.0
  %1117 = vmatprep.subr.mxu0 0.0
  %1118 = vmatpush1.msra.mxu0 0.0
  %1119 = vmatprep.subr.mxu0 0.0
  %1120 = vmatpush1.msra.mxu0 0.0
  %1121 = vmatprep.subr.mxu0 0.0
  %1122 = vmatpush1.msra.mxu0 0.0
  %1123 = vmatprep.subr.mxu0 0.0
  %1124 = vmatpush1.msra.mxu0 0.0
  %1125 = vmatprep.subr.mxu0 0.0
  %1126 = vmatpush1.msra.mxu0 0.0
  %1127 = vmatprep.subr.mxu0 0.0
  %1128 = vmatpush1.msra.mxu0 0.0
  %1129 = vmatprep.mubr.f32.mxu0 0.0
  %1130 = vmatmul.mubr.f32.gmra.mrb[0].mxu0 %v1063
  %v1131 = vpop.f32.mrb[0].mxu0
  %v1132 = vadd.f32 %v29, %v1131
  %v1133 = vpop.f32.mrb[0].mxu0
  %1134 = vdwg.mxu0
  %v1135 = vadd.f32 %v1062, %v1132
  %v1136 = vmul.f32 %v1135, 0.5
  %v1137 = vtanh.pop %v1136
  %v1138 = vmul.f32 %v1137, 0.5
  %v1139 = vadd.f32 %v1138, 0.5
  %1141 = vrot.lane.b32.xlu0 %v1132, 64
  %v1142 = vpop.permute.xlu0 %1141
  %v1144 = vmul.f32 %v1139, %v1142
  %1146 = vrot.lane.b32.xlu0 %v1144, 64
  %v1147 = vpop.permute.xlu0 %1146
  %v1149 = vadd.f32 %v1062, %v1147
  %v1150 = vtanh.pop %v1149
  %v1151 = vsub.f32 1.0, %v1139
  %1153 = vrot.lane.b32.xlu0 %v1150, 96
  %v1154 = vpop.permute.xlu0 %1153
  %v1156 = vmul.f32 %v1151, %v1154
  %v1157 = vmul.f32 %v1139, %v1054
  %v1158 = vadd.f32 %v1156, %v1157
  %1160 = vrot.lane.b32.xlu0 %v1158, 96
  %v1161 = vpop.permute.xlu0 %1160
  %s1163 = scalar_lea.vmem [#allocation3], 56
  %1164 = vst.msk [vmem:[%s1163] sm:$0xff] %vm191, %v1161
  %v1165 = vld [vmem:[#allocation3] sm:$0xff]
  %v1166 = vld [vmem:[#allocation3 + $0x8] sm:$0xff]
  %v1167 = vld [vmem:[#allocation3 + $0x10] sm:$0xff]
  %v1168 = vld [vmem:[#allocation3 + $0x18] sm:$0xff]
  %v1169 = vld [vmem:[#allocation3 + $0x20] sm:$0xff]
  %v1170 = vld [vmem:[#allocation3 + $0x28] sm:$0xff]
  %v1171 = vld [vmem:[#allocation3 + $0x30] sm:$0xff]
  %v1172 = vld [vmem:[#allocation3 + $0x38] sm:$0xff]
  %v1173 = vld [vmem:[%s4] sm:$0xff]
  %v1174 = vld [vmem:[%s4 + $0x8] sm:$0xff]
  %v1175 = vld [vmem:[%s4 + $0x10] sm:$0xff]
  %v1176 = vld [vmem:[%s4 + $0x18] sm:$0xff]
  %v1177 = vlaneseq
  %v1178 = vshrl.u32 %v1177, 7
  %v1179 = vsub.s32 0, %v1178
  %v1180 = vrot.slane %v30, %v1179
  %v1182 = vsel %vm191, %v1165, 0
  %v1185 = vsel %vm191, %v1166, 0
  %v1188 = vsel %vm191, %v1167, 0
  %v1191 = vsel %vm191, %v1168, 0
  %v1194 = vsel %vm191, %v1169, 0
  %v1197 = vsel %vm191, %v1170, 0
  %v1200 = vsel %vm191, %v1171, 0
  %v1203 = vsel %vm191, %v1172, 0
  %1205 = vmatprep.subr.mxu0 0.0
  %1206 = vmatpush1.msra.mxu0 %v1173
  %1207 = vmatprep.subr.mxu0 0.0
  %1208 = vmatpush1.msra.mxu0 %v1174
  %1209 = vmatprep.subr.mxu0 0.0
  %1210 = vmatpush1.msra.mxu0 %v1175
  %1211 = vmatprep.subr.mxu0 0.0
  %1212 = vmatpush1.msra.mxu0 %v1176
  %1213 = vmatprep.subr.mxu0 0.0
  %1214 = vmatpush1.msra.mxu0 0.0
  %1215 = vmatprep.subr.mxu0 0.0
  %1216 = vmatpush1.msra.mxu0 0.0
  %1217 = vmatprep.subr.mxu0 0.0
  %1218 = vmatpush1.msra.mxu0 0.0
  %1219 = vmatprep.subr.mxu0 0.0
  %1220 = vmatpush1.msra.mxu0 0.0
  %1221 = vmatprep.subr.mxu0 0.0
  %1222 = vmatpush1.msra.mxu0 0.0
  %1223 = vmatprep.subr.mxu0 0.0
  %1224 = vmatpush1.msra.mxu0 0.0
  %1225 = vmatprep.subr.mxu0 0.0
  %1226 = vmatpush1.msra.mxu0 0.0
  %1227 = vmatprep.subr.mxu0 0.0
  %1228 = vmatpush1.msra.mxu0 0.0
  %1229 = vmatprep.subr.mxu0 0.0
  %1230 = vmatpush1.msra.mxu0 0.0
  %1231 = vmatprep.subr.mxu0 0.0
  %1232 = vmatpush1.msra.mxu0 0.0
  %1233 = vmatprep.subr.mxu0 0.0
  %1234 = vmatpush1.msra.mxu0 0.0
  %1235 = vmatprep.subr.mxu0 0.0
  %1236 = vmatpush1.msra.mxu0 0.0
  %1237 = vmatprep.subr.mxu0 0.0
  %1238 = vmatpush1.msra.mxu0 0.0
  %1239 = vmatprep.subr.mxu0 0.0
  %1240 = vmatpush1.msra.mxu0 0.0
  %1241 = vmatprep.subr.mxu0 0.0
  %1242 = vmatpush1.msra.mxu0 0.0
  %1243 = vmatprep.subr.mxu0 0.0
  %1244 = vmatpush1.msra.mxu0 0.0
  %1245 = vmatprep.subr.mxu0 0.0
  %1246 = vmatpush1.msra.mxu0 0.0
  %1247 = vmatprep.subr.mxu0 0.0
  %1248 = vmatpush1.msra.mxu0 0.0
  %1249 = vmatprep.subr.mxu0 0.0
  %1250 = vmatpush1.msra.mxu0 0.0
  %1251 = vmatprep.subr.mxu0 0.0
  %1252 = vmatpush1.msra.mxu0 0.0
  %1253 = vmatprep.subr.mxu0 0.0
  %1254 = vmatpush1.msra.mxu0 0.0
  %1255 = vmatprep.subr.mxu0 0.0
  %1256 = vmatpush1.msra.mxu0 0.0
  %1257 = vmatprep.subr.mxu0 0.0
  %1258 = vmatpush1.msra.mxu0 0.0
  %1259 = vmatprep.subr.mxu0 0.0
  %1260 = vmatpush1.msra.mxu0 0.0
  %1261 = vmatprep.subr.mxu0 0.0
  %1262 = vmatpush1.msra.mxu0 0.0
  %1263 = vmatprep.subr.mxu0 0.0
  %1264 = vmatpush1.msra.mxu0 0.0
  %1265 = vmatprep.subr.mxu0 0.0
  %1266 = vmatpush1.msra.mxu0 0.0
  %1267 = vmatprep.subr.mxu0 0.0
  %1268 = vmatpush1.msra.mxu0 0.0
  %1269 = vmatprep.mubr.f32.mxu0 0.0
  %1270 = vmatmul.mubr.f32.gmra.mrb[0].mxu0 %v1182
  %v1271 = vpop.f32.mrb[0].mxu0
  %v1272 = vadd.f32 %v1180, %v1271
  %v1273 = vpop.f32.mrb[0].mxu0
  %1274 = vmatprep.mubr.f32.mxu0 0.0
  %1275 = vmatmul.mubr.f32.gmra.mrb[0].mxu0 %v1185
  %v1276 = vpop.f32.mrb[0].mxu0
  %v1277 = vadd.f32 %v1180, %v1276
  %v1278 = vpop.f32.mrb[0].mxu0
  %1279 = vmatprep.mubr.f32.mxu0 0.0
  %1280 = vmatmul.mubr.f32.gmra.mrb[0].mxu0 %v1188
  %v1281 = vpop.f32.mrb[0].mxu0
  %v1282 = vadd.f32 %v1180, %v1281
  %v1283 = vpop.f32.mrb[0].mxu0
  %1284 = vmatprep.mubr.f32.mxu0 0.0
  %1285 = vmatmul.mubr.f32.gmra.mrb[0].mxu0 %v1191
  %v1286 = vpop.f32.mrb[0].mxu0
  %v1287 = vadd.f32 %v1180, %v1286
  %v1288 = vpop.f32.mrb[0].mxu0
  %1289 = vmatprep.mubr.f32.mxu0 0.0
  %1290 = vmatmul.mubr.f32.gmra.mrb[0].mxu0 %v1194
  %v1291 = vpop.f32.mrb[0].mxu0
  %v1292 = vadd.f32 %v1180, %v1291
  %v1293 = vpop.f32.mrb[0].mxu0
  %1294 = vmatprep.mubr.f32.mxu0 0.0
  %1295 = vmatmul.mubr.f32.gmra.mrb[0].mxu0 %v1197
  %v1296 = vpop.f32.mrb[0].mxu0
  %v1297 = vadd.f32 %v1180, %v1296
  %v1298 = vpop.f32.mrb[0].mxu0
  %1299 = vmatprep.mubr.f32.mxu0 0.0
  %1300 = vmatmul.mubr.f32.gmra.mrb[0].mxu0 %v1200
  %v1301 = vpop.f32.mrb[0].mxu0
  %v1302 = vadd.f32 %v1180, %v1301
  %v1303 = vpop.f32.mrb[0].mxu0
  %1304 = vmatprep.mubr.f32.mxu0 0.0
  %1305 = vmatmul.mubr.f32.gmra.mrb[0].mxu0 %v1203
  %v1306 = vpop.f32.mrb[0].mxu0
  %v1307 = vadd.f32 %v1180, %v1306
  %v1308 = vpop.f32.mrb[0].mxu0
  %1309 = vdwg.mxu0
  %vm1310 = vcmask 31744
  %1311 = vst.msk [vmem:[%s6] sm:$0xff] %vm1310, %v1272
  %1312 = vst.msk [vmem:[%s6 + $0x8] sm:$0xff] %vm1310, %v1277
  %1313 = vst.msk [vmem:[%s6 + $0x10] sm:$0xff] %vm1310, %v1282
  %1314 = vst.msk [vmem:[%s6 + $0x18] sm:$0xff] %vm1310, %v1287
  %1315 = vst.msk [vmem:[%s6 + $0x20] sm:$0xff] %vm1310, %v1292
  %1316 = vst.msk [vmem:[%s6 + $0x28] sm:$0xff] %vm1310, %v1297
  %1317 = vst.msk [vmem:[%s6 + $0x30] sm:$0xff] %vm1310, %v1302
  %1318 = vst.msk [vmem:[%s6 + $0x38] sm:$0xff] %vm1310, %v1307
  // Predicated region
  $region26: #{tpu_custom_call.1} parent=0 // pred_check
    _
  $region27: #{tpu_custom_call.1} parent=0 // pred_check_branch
    %1320 = sbr.rel (0) target = $region29
  $region28: #{tpu_custom_call.1} parent=0 // pred_region
    _
  $region29: #{tpu_custom_call.1} parent=0 // pred_fallthru
    _
  // Predicated region
  $region30: #{tpu_custom_call.1} parent=0 // pred_check
    _
  $region31: #{tpu_custom_call.1} parent=0 // pred_check_branch
    %1322 = sbr.rel (0) target = $region33
  $region32: #{tpu_custom_call.1} parent=0 // pred_region
    _
  $region33: #{tpu_custom_call.1} parent=0 // pred_fallthru
    _

</llo_original>
